<compile_context>
chip_gen: v7x
topology: tpu7x:2x2x1
jax: 0.10.0
libtpu: 0.0.40
codegen_flags: <defaults>
</compile_context>

<pallas_src>
import functools

import jax
import jax.numpy as jnp
from jax.experimental import pallas as pl
from jax.experimental.pallas import tpu as pltpu

D_MODEL = 64
DFF = 256
HEADS = 4
HEAD_DIM = D_MODEL // HEADS
LN_EPS = 1e-5


def _layer_norm(x, gamma, beta):
    mean = jnp.mean(x, axis=-1, keepdims=True)
    var = jnp.mean((x - mean) ** 2, axis=-1, keepdims=True)
    return (x - mean) * jax.lax.rsqrt(var + LN_EPS) * gamma + beta


def _encoder_block_kernel(
    x_ref,
    wqkv_ref, bqkv_ref, wo_ref, bo_ref,
    g1_ref, be1_ref,
    w1_ref, b1_ref, w2_ref, b2_ref,
    g2_ref, be2_ref,
    out_ref,
    *, b_tile, seq_len,
):
    rows = b_tile * seq_len
    x = x_ref[...]                                   # (rows, D) f32
    x_bf = x.astype(jnp.bfloat16)

    # --- fused QKV projection (bf16 MXU, f32 accumulate) --------------------
    qkv = jnp.dot(x_bf, wqkv_ref[...],
                  preferred_element_type=jnp.float32) + bqkv_ref[...]
    # Per-sequence view for attention; rows is a multiple of seq_len by
    # construction and sublane-aligned (rows % 8 == 0 in the tiling chooser).
    qkv3 = qkv.reshape(b_tile, seq_len, 3 * D_MODEL)

    scale = 1.0 / jnp.sqrt(jnp.float32(HEAD_DIM))
    head_outs = []
    for h in range(HEADS):  # static unroll over heads
        q_lo = h * HEAD_DIM
        k_lo = D_MODEL + h * HEAD_DIM
        v_lo = 2 * D_MODEL + h * HEAD_DIM
        qh = qkv3[:, :, q_lo:q_lo + HEAD_DIM].astype(jnp.bfloat16)
        kh = qkv3[:, :, k_lo:k_lo + HEAD_DIM].astype(jnp.bfloat16)
        vh = qkv3[:, :, v_lo:v_lo + HEAD_DIM].astype(jnp.bfloat16)
        # (b, S, S) attention scores, f32 accumulation.
        s = jnp.einsum("bqd,bkd->bqk", qh, kh,
                       preferred_element_type=jnp.float32) * scale
        s = s - jnp.max(s, axis=-1, keepdims=True)
        p = jnp.exp(s)
        p = p * pl.reciprocal(jnp.sum(p, axis=-1, keepdims=True), approx=True)
        oh = jnp.einsum("bqk,bkd->bqd", p.astype(jnp.bfloat16), vh,
                        preferred_element_type=jnp.float32)
        head_outs.append(oh)
    attn = jnp.concatenate(head_outs, axis=-1).reshape(rows, D_MODEL)

    # Output projection + first residual/LayerNorm.
    attn = jnp.dot(attn.astype(jnp.bfloat16), wo_ref[...],
                   preferred_element_type=jnp.float32) + bo_ref[...]
    x1 = _layer_norm(x + attn, g1_ref[...], be1_ref[...])

    # --- MLP -----------------------------------------------------------------
    hdn = jnp.dot(x1.astype(jnp.bfloat16), w1_ref[...],
                  preferred_element_type=jnp.float32) + b1_ref[...]
    hdn = jnp.maximum(hdn, 0.0)
    y = jnp.dot(hdn.astype(jnp.bfloat16), w2_ref[...],
                preferred_element_type=jnp.float32) + b2_ref[...]

    out_ref[...] = _layer_norm(x1 + y, g2_ref[...], be2_ref[...])


def _pick_batch_tile(batch, seq_len, target_rows=512):
    """Largest divisor of `batch` whose row count (d*seq_len) stays <= target
    and remains sublane-aligned; fall back to the full batch (block == full
    array is always a legal BlockSpec)."""
    best = 0
    for d in range(1, batch + 1):
        if batch % d == 0 and d * seq_len <= target_rows and (d * seq_len) % 8 == 0:
            best = d
    return best if best > 0 else batch


def encoder_block(x, kparams):
    B, S, D = x.shape
    assert D == D_MODEL

    b_tile = _pick_batch_tile(B, S)
    rows_per_step = b_tile * S
    total_rows = B * S
    grid = (total_rows // rows_per_step,)

    # Wrapper-side flatten keeps the kernel's output slab row-dense.
    x_flat = x.reshape(total_rows, D)

    param_order = ("wqkv", "bqkv", "wo", "bo", "g1", "be1",
                   "w1", "b1", "w2", "b2", "g2", "be2")
    param_arrays = [kparams[n] for n in param_order]

    def const_spec(p):
        # Whole-array block, same block for every grid step (resident weights).
        return pl.BlockSpec(p.shape, lambda i: (0, 0))

    in_specs = [pl.BlockSpec((rows_per_step, D), lambda i: (i, 0))] + [
        const_spec(p) for p in param_arrays
    ]

    kernel = functools.partial(_encoder_block_kernel, b_tile=b_tile, seq_len=S)

    out_flat = pl.pallas_call(
        kernel,
        out_shape=jax.ShapeDtypeStruct((total_rows, D), jnp.float32),
        grid_spec=pltpu.PrefetchScalarGridSpec(
            num_scalar_prefetch=0,
            grid=grid,
            in_specs=in_specs,
            out_specs=pl.BlockSpec((rows_per_step, D), lambda i: (i, 0)),
        ),
        compiler_params=pltpu.CompilerParams(
            dimension_semantics=("parallel",)),
    )(x_flat, *param_arrays)

    return out_flat.reshape(B, S, D)


def init_params(key):
    """PyTorch-equivalent parameters, stored pre-transposed as (fan_in, fan_out)
    so both the reference and the kernel compute y = x @ W + b."""
    ks = jax.random.split(key, 16)
    scale = 0.02

    def lin(k, fi, fo):
        return jax.random.normal(k, (fi, fo), jnp.float32) * scale

    def bias(k, n):
        return jax.random.normal(k, (1, n), jnp.float32) * scale

    return {
        "wq": lin(ks[0], D_MODEL, D_MODEL), "bq": bias(ks[1], D_MODEL),
        "wk": lin(ks[2], D_MODEL, D_MODEL), "bk": bias(ks[3], D_MODEL),
        "wv": lin(ks[4], D_MODEL, D_MODEL), "bv": bias(ks[5], D_MODEL),
        "wo": lin(ks[6], D_MODEL, D_MODEL), "bo": bias(ks[7], D_MODEL),
        "g1": jnp.ones((1, D_MODEL), jnp.float32),
        "be1": jnp.zeros((1, D_MODEL), jnp.float32),
        "w1": lin(ks[8], D_MODEL, DFF), "b1": bias(ks[9], DFF),
        "w2": lin(ks[10], DFF, D_MODEL), "b2": bias(ks[11], D_MODEL),
        "g2": jnp.ones((1, D_MODEL), jnp.float32),
        "be2": jnp.zeros((1, D_MODEL), jnp.float32),
    }


def prepare_kernel_params(p):
    """Fuse QKV and cast matmul weights to bf16 (biases / LN params stay f32)."""
    return {
        "wqkv": jnp.concatenate([p["wq"], p["wk"], p["wv"]],
                                axis=1).astype(jnp.bfloat16),
        "bqkv": jnp.concatenate([p["bq"], p["bk"], p["bv"]], axis=1),
        "wo": p["wo"].astype(jnp.bfloat16), "bo": p["bo"],
        "g1": p["g1"], "be1": p["be1"],
        "w1": p["w1"].astype(jnp.bfloat16), "b1": p["b1"],
        "w2": p["w2"].astype(jnp.bfloat16), "b2": p["b2"],
        "g2": p["g2"], "be2": p["be2"],
    }


def encoder_block_ref(x, p):
    """Pure-JAX f32 reference for the correctness check."""
    B, S, D = x.shape
    q = x @ p["wq"] + p["bq"]
    k = x @ p["wk"] + p["bk"]
    v = x @ p["wv"] + p["bv"]
    q = q.reshape(B, S, HEADS, HEAD_DIM).transpose(0, 2, 1, 3)
    k = k.reshape(B, S, HEADS, HEAD_DIM).transpose(0, 2, 1, 3)
    v = v.reshape(B, S, HEADS, HEAD_DIM).transpose(0, 2, 1, 3)
    s = jnp.einsum("bhqd,bhkd->bhqk", q, k) / jnp.sqrt(jnp.float32(HEAD_DIM))
    a = jax.nn.softmax(s, axis=-1)
    o = jnp.einsum("bhqk,bhkd->bhqd", a, v).transpose(0, 2, 1, 3).reshape(B, S, D)
    o = o @ p["wo"] + p["bo"]
    x1 = _layer_norm(x + o, p["g1"], p["be1"])
    h = jax.nn.relu(x1 @ p["w1"] + p["b1"])
    y = h @ p["w2"] + p["b2"]
    return _layer_norm(x1 + y, p["g2"], p["be2"])


if __name__ == "__main__":
    key = jax.random.PRNGKey(0)
    kx, kp = jax.random.split(key)

    B, S = 2, 8
    x = jax.random.normal(kx, (B, S, D_MODEL), jnp.float32)
    params = init_params(kp)
    kparams = prepare_kernel_params(params)

    out = jax.block_until_ready(encoder_block(x, kparams))

    ref = encoder_block_ref(x, params)
    assert out.shape == (B, S, D_MODEL)
    max_err = float(jnp.max(jnp.abs(out - ref)))
    assert jnp.allclose(out, ref, atol=2e-2, rtol=2e-2), (
        f"mismatch vs reference (max abs err {max_err})")

    print("KERNEL_OK")
</pallas_src>

<mosaic_0001>
module attributes {stable_mosaic.version = 11 : i64} {
  func.func @_encoder_block_kernel(%arg0: i32, %arg1: memref<16x64xf32, #tpu.memory_space<vmem>>, %arg2: memref<64x192xbf16, #tpu.memory_space<vmem>>, %arg3: memref<1x192xf32, #tpu.memory_space<vmem>>, %arg4: memref<64x64xbf16, #tpu.memory_space<vmem>>, %arg5: memref<1x64xf32, #tpu.memory_space<vmem>>, %arg6: memref<1x64xf32, #tpu.memory_space<vmem>>, %arg7: memref<1x64xf32, #tpu.memory_space<vmem>>, %arg8: memref<64x256xbf16, #tpu.memory_space<vmem>>, %arg9: memref<1x256xf32, #tpu.memory_space<vmem>>, %arg10: memref<256x64xbf16, #tpu.memory_space<vmem>>, %arg11: memref<1x64xf32, #tpu.memory_space<vmem>>, %arg12: memref<1x64xf32, #tpu.memory_space<vmem>>, %arg13: memref<1x64xf32, #tpu.memory_space<vmem>>, %arg14: memref<16x64xf32, #tpu.memory_space<vmem>>) attributes {dimension_semantics = [#tpu.dimension_semantics<parallel>], iteration_bounds = array<i64: 1>, scalar_prefetch = 0 : i64, scratch_operands = 0 : i64, tpu.core_type = #tpu.core_type<tc>, window_params = [{transform_indices = @transform_0, window_bounds = array<i64: 16, 64>}, {pipeline_mode = #tpu.pipeline_mode<synchronous>, transform_indices = @transform_1, window_bounds = array<i64: 64, 192>}, {pipeline_mode = #tpu.pipeline_mode<synchronous>, transform_indices = @transform_2, window_bounds = array<i64: 1, 192>}, {pipeline_mode = #tpu.pipeline_mode<synchronous>, transform_indices = @transform_3, window_bounds = array<i64: 64, 64>}, {pipeline_mode = #tpu.pipeline_mode<synchronous>, transform_indices = @transform_4, window_bounds = array<i64: 1, 64>}, {pipeline_mode = #tpu.pipeline_mode<synchronous>, transform_indices = @transform_5, window_bounds = array<i64: 1, 64>}, {pipeline_mode = #tpu.pipeline_mode<synchronous>, transform_indices = @transform_6, window_bounds = array<i64: 1, 64>}, {pipeline_mode = #tpu.pipeline_mode<synchronous>, transform_indices = @transform_7, window_bounds = array<i64: 64, 256>}, {pipeline_mode = #tpu.pipeline_mode<synchronous>, transform_indices = @transform_8, window_bounds = array<i64: 1, 256>}, {pipeline_mode = #tpu.pipeline_mode<synchronous>, transform_indices = @transform_9, window_bounds = array<i64: 256, 64>}, {pipeline_mode = #tpu.pipeline_mode<synchronous>, transform_indices = @transform_10, window_bounds = array<i64: 1, 64>}, {pipeline_mode = #tpu.pipeline_mode<synchronous>, transform_indices = @transform_11, window_bounds = array<i64: 1, 64>}, {pipeline_mode = #tpu.pipeline_mode<synchronous>, transform_indices = @transform_12, window_bounds = array<i64: 1, 64>}, {transform_indices = @transform_13, window_bounds = array<i64: 16, 64>}]} {
    %c0 = arith.constant 0 : index
    %c0_0 = arith.constant 0 : index
    %0 = vector.load %arg1[%c0, %c0_0] : memref<16x64xf32, #tpu.memory_space<vmem>>, vector<16x64xf32>
    %1 = arith.truncf %0 : vector<16x64xf32> to vector<16x64xbf16>
    %c0_1 = arith.constant 0 : index
    %c0_2 = arith.constant 0 : index
    %2 = vector.load %arg2[%c0_1, %c0_2] : memref<64x192xbf16, #tpu.memory_space<vmem>>, vector<64x192xbf16>
    %cst = arith.constant dense<0.000000e+00> : vector<16x192xf32>
    %3 = tpu.matmul %1, %2, %cst {dimension_numbers = #tpu.dot_dimension_numbers<[1], [0], [0], [1], [0, 0, 1, 1], [], []>} : vector<16x64xbf16>, vector<64x192xbf16>, vector<16x192xf32> -> vector<16x192xf32>
    %c0_3 = arith.constant 0 : index
    %c0_4 = arith.constant 0 : index
    %4 = vector.load %arg3[%c0_3, %c0_4] : memref<1x192xf32, #tpu.memory_space<vmem>>, vector<1x192xf32>
    %5 = vector.broadcast %4 : vector<1x192xf32> to vector<16x192xf32>
    %6 = arith.addf %3, %5 : vector<16x192xf32>
    %7 = vector.shape_cast %6 : vector<16x192xf32> to vector<2x8x192xf32>
    %cst_5 = arith.constant 1.600000e+01 : f32
    %8 = math.sqrt %cst_5 : f32
    %cst_6 = arith.constant 1.000000e+00 : f32
    %9 = arith.divf %cst_6, %8 : f32
    %10 = vector.extract_strided_slice %7 {offsets = [0, 0, 0], sizes = [2, 8, 16], strides = [1, 1, 1]} : vector<2x8x192xf32> to vector<2x8x16xf32>
    %11 = arith.truncf %10 : vector<2x8x16xf32> to vector<2x8x16xbf16>
    %12 = vector.extract_strided_slice %7 {offsets = [0, 0, 64], sizes = [2, 8, 16], strides = [1, 1, 1]} : vector<2x8x192xf32> to vector<2x8x16xf32>
    %13 = arith.truncf %12 : vector<2x8x16xf32> to vector<2x8x16xbf16>
    %14 = vector.extract_strided_slice %7 {offsets = [0, 0, 128], sizes = [2, 8, 16], strides = [1, 1, 1]} : vector<2x8x192xf32> to vector<2x8x16xf32>
    %15 = arith.truncf %14 : vector<2x8x16xf32> to vector<2x8x16xbf16>
    "tpu.trace_start"() <{level = 10 : i32, message = "bqd,bkd->bqk"}> : () -> ()
    %cst_7 = arith.constant dense<0.000000e+00> : vector<2x8x8xf32>
    %16 = tpu.matmul %11, %13, %cst_7 {dimension_numbers = #tpu.dot_dimension_numbers<[2], [2], [1], [1], [0, 0, 0, 1, 1, 1], [0], [0]>} : vector<2x8x16xbf16>, vector<2x8x16xbf16>, vector<2x8x8xf32> -> vector<2x8x8xf32>
    "tpu.trace_stop"() : () -> ()
    %17 = vector.broadcast %9 : f32 to vector<2x8x8xf32>
    %18 = arith.mulf %16, %17 : vector<2x8x8xf32>
    %cst_8 = arith.constant dense<0xFF800000> : vector<2x8xf32>
    %19 = vector.multi_reduction <maximumf>, %18, %cst_8 [2] : vector<2x8x8xf32> to vector<2x8xf32>
    %20 = vector.shape_cast %19 : vector<2x8xf32> to vector<2x8x1xf32>
    %21 = vector.broadcast %20 : vector<2x8x1xf32> to vector<2x8x8xf32>
    %22 = arith.subf %18, %21 : vector<2x8x8xf32>
    %23 = math.exp %22 : vector<2x8x8xf32>
    %cst_9 = arith.constant dense<0.000000e+00> : vector<2x8xf32>
    %24 = vector.multi_reduction <add>, %23, %cst_9 [2] : vector<2x8x8xf32> to vector<2x8xf32>
    %25 = vector.shape_cast %24 : vector<2x8xf32> to vector<2x8x1xf32>
    %26 = tpu.reciprocal %25 {approx = true} : vector<2x8x1xf32> -> vector<2x8x1xf32>
    %27 = vector.broadcast %26 : vector<2x8x1xf32> to vector<2x8x8xf32>
    %28 = arith.mulf %23, %27 : vector<2x8x8xf32>
    %29 = arith.truncf %28 : vector<2x8x8xf32> to vector<2x8x8xbf16>
    "tpu.trace_start"() <{level = 10 : i32, message = "bqk,bkd->bqd"}> : () -> ()
    %cst_10 = arith.constant dense<0.000000e+00> : vector<2x8x16xf32>
    %30 = tpu.matmul %29, %15, %cst_10 {dimension_numbers = #tpu.dot_dimension_numbers<[2], [1], [1], [2], [0, 0, 0, 1, 1, 2], [0], [0]>} : vector<2x8x8xbf16>, vector<2x8x16xbf16>, vector<2x8x16xf32> -> vector<2x8x16xf32>
    "tpu.trace_stop"() : () -> ()
    %31 = vector.extract_strided_slice %7 {offsets = [0, 0, 16], sizes = [2, 8, 16], strides = [1, 1, 1]} : vector<2x8x192xf32> to vector<2x8x16xf32>
    %32 = arith.truncf %31 : vector<2x8x16xf32> to vector<2x8x16xbf16>
    %33 = vector.extract_strided_slice %7 {offsets = [0, 0, 80], sizes = [2, 8, 16], strides = [1, 1, 1]} : vector<2x8x192xf32> to vector<2x8x16xf32>
    %34 = arith.truncf %33 : vector<2x8x16xf32> to vector<2x8x16xbf16>
    %35 = vector.extract_strided_slice %7 {offsets = [0, 0, 144], sizes = [2, 8, 16], strides = [1, 1, 1]} : vector<2x8x192xf32> to vector<2x8x16xf32>
    %36 = arith.truncf %35 : vector<2x8x16xf32> to vector<2x8x16xbf16>
    "tpu.trace_start"() <{level = 10 : i32, message = "bqd,bkd->bqk"}> : () -> ()
    %cst_11 = arith.constant dense<0.000000e+00> : vector<2x8x8xf32>
    %37 = tpu.matmul %32, %34, %cst_11 {dimension_numbers = #tpu.dot_dimension_numbers<[2], [2], [1], [1], [0, 0, 0, 1, 1, 1], [0], [0]>} : vector<2x8x16xbf16>, vector<2x8x16xbf16>, vector<2x8x8xf32> -> vector<2x8x8xf32>
    "tpu.trace_stop"() : () -> ()
    %38 = vector.broadcast %9 : f32 to vector<2x8x8xf32>
    %39 = arith.mulf %37, %38 : vector<2x8x8xf32>
    %cst_12 = arith.constant dense<0xFF800000> : vector<2x8xf32>
    %40 = vector.multi_reduction <maximumf>, %39, %cst_12 [2] : vector<2x8x8xf32> to vector<2x8xf32>
    %41 = vector.shape_cast %40 : vector<2x8xf32> to vector<2x8x1xf32>
    %42 = vector.broadcast %41 : vector<2x8x1xf32> to vector<2x8x8xf32>
    %43 = arith.subf %39, %42 : vector<2x8x8xf32>
    %44 = math.exp %43 : vector<2x8x8xf32>
    %cst_13 = arith.constant dense<0.000000e+00> : vector<2x8xf32>
    %45 = vector.multi_reduction <add>, %44, %cst_13 [2] : vector<2x8x8xf32> to vector<2x8xf32>
    %46 = vector.shape_cast %45 : vector<2x8xf32> to vector<2x8x1xf32>
    %47 = tpu.reciprocal %46 {approx = true} : vector<2x8x1xf32> -> vector<2x8x1xf32>
    %48 = vector.broadcast %47 : vector<2x8x1xf32> to vector<2x8x8xf32>
    %49 = arith.mulf %44, %48 : vector<2x8x8xf32>
    %50 = arith.truncf %49 : vector<2x8x8xf32> to vector<2x8x8xbf16>
    "tpu.trace_start"() <{level = 10 : i32, message = "bqk,bkd->bqd"}> : () -> ()
    %cst_14 = arith.constant dense<0.000000e+00> : vector<2x8x16xf32>
    %51 = tpu.matmul %50, %36, %cst_14 {dimension_numbers = #tpu.dot_dimension_numbers<[2], [1], [1], [2], [0, 0, 0, 1, 1, 2], [0], [0]>} : vector<2x8x8xbf16>, vector<2x8x16xbf16>, vector<2x8x16xf32> -> vector<2x8x16xf32>
    "tpu.trace_stop"() : () -> ()
    %52 = vector.extract_strided_slice %7 {offsets = [0, 0, 32], sizes = [2, 8, 16], strides = [1, 1, 1]} : vector<2x8x192xf32> to vector<2x8x16xf32>
    %53 = arith.truncf %52 : vector<2x8x16xf32> to vector<2x8x16xbf16>
    %54 = vector.extract_strided_slice %7 {offsets = [0, 0, 96], sizes = [2, 8, 16], strides = [1, 1, 1]} : vector<2x8x192xf32> to vector<2x8x16xf32>
    %55 = arith.truncf %54 : vector<2x8x16xf32> to vector<2x8x16xbf16>
    %56 = vector.extract_strided_slice %7 {offsets = [0, 0, 160], sizes = [2, 8, 16], strides = [1, 1, 1]} : vector<2x8x192xf32> to vector<2x8x16xf32>
    %57 = arith.truncf %56 : vector<2x8x16xf32> to vector<2x8x16xbf16>
    "tpu.trace_start"() <{level = 10 : i32, message = "bqd,bkd->bqk"}> : () -> ()
    %cst_15 = arith.constant dense<0.000000e+00> : vector<2x8x8xf32>
    %58 = tpu.matmul %53, %55, %cst_15 {dimension_numbers = #tpu.dot_dimension_numbers<[2], [2], [1], [1], [0, 0, 0, 1, 1, 1], [0], [0]>} : vector<2x8x16xbf16>, vector<2x8x16xbf16>, vector<2x8x8xf32> -> vector<2x8x8xf32>
    "tpu.trace_stop"() : () -> ()
    %59 = vector.broadcast %9 : f32 to vector<2x8x8xf32>
    %60 = arith.mulf %58, %59 : vector<2x8x8xf32>
    %cst_16 = arith.constant dense<0xFF800000> : vector<2x8xf32>
    %61 = vector.multi_reduction <maximumf>, %60, %cst_16 [2] : vector<2x8x8xf32> to vector<2x8xf32>
    %62 = vector.shape_cast %61 : vector<2x8xf32> to vector<2x8x1xf32>
    %63 = vector.broadcast %62 : vector<2x8x1xf32> to vector<2x8x8xf32>
    %64 = arith.subf %60, %63 : vector<2x8x8xf32>
    %65 = math.exp %64 : vector<2x8x8xf32>
    %cst_17 = arith.constant dense<0.000000e+00> : vector<2x8xf32>
    %66 = vector.multi_reduction <add>, %65, %cst_17 [2] : vector<2x8x8xf32> to vector<2x8xf32>
    %67 = vector.shape_cast %66 : vector<2x8xf32> to vector<2x8x1xf32>
    %68 = tpu.reciprocal %67 {approx = true} : vector<2x8x1xf32> -> vector<2x8x1xf32>
    %69 = vector.broadcast %68 : vector<2x8x1xf32> to vector<2x8x8xf32>
    %70 = arith.mulf %65, %69 : vector<2x8x8xf32>
    %71 = arith.truncf %70 : vector<2x8x8xf32> to vector<2x8x8xbf16>
    "tpu.trace_start"() <{level = 10 : i32, message = "bqk,bkd->bqd"}> : () -> ()
    %cst_18 = arith.constant dense<0.000000e+00> : vector<2x8x16xf32>
    %72 = tpu.matmul %71, %57, %cst_18 {dimension_numbers = #tpu.dot_dimension_numbers<[2], [1], [1], [2], [0, 0, 0, 1, 1, 2], [0], [0]>} : vector<2x8x8xbf16>, vector<2x8x16xbf16>, vector<2x8x16xf32> -> vector<2x8x16xf32>
    "tpu.trace_stop"() : () -> ()
    %73 = vector.extract_strided_slice %7 {offsets = [0, 0, 48], sizes = [2, 8, 16], strides = [1, 1, 1]} : vector<2x8x192xf32> to vector<2x8x16xf32>
    %74 = arith.truncf %73 : vector<2x8x16xf32> to vector<2x8x16xbf16>
    %75 = vector.extract_strided_slice %7 {offsets = [0, 0, 112], sizes = [2, 8, 16], strides = [1, 1, 1]} : vector<2x8x192xf32> to vector<2x8x16xf32>
    %76 = arith.truncf %75 : vector<2x8x16xf32> to vector<2x8x16xbf16>
    %77 = vector.extract_strided_slice %7 {offsets = [0, 0, 176], sizes = [2, 8, 16], strides = [1, 1, 1]} : vector<2x8x192xf32> to vector<2x8x16xf32>
    %78 = arith.truncf %77 : vector<2x8x16xf32> to vector<2x8x16xbf16>
    "tpu.trace_start"() <{level = 10 : i32, message = "bqd,bkd->bqk"}> : () -> ()
    %cst_19 = arith.constant dense<0.000000e+00> : vector<2x8x8xf32>
    %79 = tpu.matmul %74, %76, %cst_19 {dimension_numbers = #tpu.dot_dimension_numbers<[2], [2], [1], [1], [0, 0, 0, 1, 1, 1], [0], [0]>} : vector<2x8x16xbf16>, vector<2x8x16xbf16>, vector<2x8x8xf32> -> vector<2x8x8xf32>
    "tpu.trace_stop"() : () -> ()
    %80 = vector.broadcast %9 : f32 to vector<2x8x8xf32>
    %81 = arith.mulf %79, %80 : vector<2x8x8xf32>
    %cst_20 = arith.constant dense<0xFF800000> : vector<2x8xf32>
    %82 = vector.multi_reduction <maximumf>, %81, %cst_20 [2] : vector<2x8x8xf32> to vector<2x8xf32>
    %83 = vector.shape_cast %82 : vector<2x8xf32> to vector<2x8x1xf32>
    %84 = vector.broadcast %83 : vector<2x8x1xf32> to vector<2x8x8xf32>
    %85 = arith.subf %81, %84 : vector<2x8x8xf32>
    %86 = math.exp %85 : vector<2x8x8xf32>
    %cst_21 = arith.constant dense<0.000000e+00> : vector<2x8xf32>
    %87 = vector.multi_reduction <add>, %86, %cst_21 [2] : vector<2x8x8xf32> to vector<2x8xf32>
    %88 = vector.shape_cast %87 : vector<2x8xf32> to vector<2x8x1xf32>
    %89 = tpu.reciprocal %88 {approx = true} : vector<2x8x1xf32> -> vector<2x8x1xf32>
    %90 = vector.broadcast %89 : vector<2x8x1xf32> to vector<2x8x8xf32>
    %91 = arith.mulf %86, %90 : vector<2x8x8xf32>
    %92 = arith.truncf %91 : vector<2x8x8xf32> to vector<2x8x8xbf16>
    "tpu.trace_start"() <{level = 10 : i32, message = "bqk,bkd->bqd"}> : () -> ()
    %cst_22 = arith.constant dense<0.000000e+00> : vector<2x8x16xf32>
    %93 = tpu.matmul %92, %78, %cst_22 {dimension_numbers = #tpu.dot_dimension_numbers<[2], [1], [1], [2], [0, 0, 0, 1, 1, 2], [0], [0]>} : vector<2x8x8xbf16>, vector<2x8x16xbf16>, vector<2x8x16xf32> -> vector<2x8x16xf32>
    "tpu.trace_stop"() : () -> ()
    %94 = tpu.concatenate %30, %51, %72, %93 in 2 : vector<2x8x16xf32>, vector<2x8x16xf32>, vector<2x8x16xf32>, vector<2x8x16xf32> -> vector<2x8x64xf32>
    %95 = vector.shape_cast %94 : vector<2x8x64xf32> to vector<16x64xf32>
    %96 = arith.truncf %95 : vector<16x64xf32> to vector<16x64xbf16>
    %c0_23 = arith.constant 0 : index
    %c0_24 = arith.constant 0 : index
    %97 = vector.load %arg4[%c0_23, %c0_24] : memref<64x64xbf16, #tpu.memory_space<vmem>>, vector<64x64xbf16>
    %cst_25 = arith.constant dense<0.000000e+00> : vector<16x64xf32>
    %98 = tpu.matmul %96, %97, %cst_25 {dimension_numbers = #tpu.dot_dimension_numbers<[1], [0], [0], [1], [0, 0, 1, 1], [], []>} : vector<16x64xbf16>, vector<64x64xbf16>, vector<16x64xf32> -> vector<16x64xf32>
    %c0_26 = arith.constant 0 : index
    %c0_27 = arith.constant 0 : index
    %99 = vector.load %arg5[%c0_26, %c0_27] : memref<1x64xf32, #tpu.memory_space<vmem>>, vector<1x64xf32>
    %100 = vector.broadcast %99 : vector<1x64xf32> to vector<16x64xf32>
    %101 = arith.addf %98, %100 : vector<16x64xf32>
    %102 = arith.addf %0, %101 : vector<16x64xf32>
    %c0_28 = arith.constant 0 : index
    %c0_29 = arith.constant 0 : index
    %103 = vector.load %arg6[%c0_28, %c0_29] : memref<1x64xf32, #tpu.memory_space<vmem>>, vector<1x64xf32>
    %c0_30 = arith.constant 0 : index
    %c0_31 = arith.constant 0 : index
    %104 = vector.load %arg7[%c0_30, %c0_31] : memref<1x64xf32, #tpu.memory_space<vmem>>, vector<1x64xf32>
    %cst_32 = arith.constant dense<0.000000e+00> : vector<16xf32>
    %105 = vector.multi_reduction <add>, %102, %cst_32 [1] : vector<16x64xf32> to vector<16xf32>
    %106 = vector.shape_cast %105 : vector<16xf32> to vector<16x1xf32>
    %cst_33 = arith.constant 6.400000e+01 : f32
    %107 = vector.broadcast %cst_33 : f32 to vector<16x1xf32>
    %108 = arith.divf %106, %107 : vector<16x1xf32>
    %109 = vector.broadcast %108 : vector<16x1xf32> to vector<16x64xf32>
    %110 = arith.subf %102, %109 : vector<16x64xf32>
    %111 = arith.mulf %110, %110 : vector<16x64xf32>
    %cst_34 = arith.constant dense<0.000000e+00> : vector<16xf32>
    %112 = vector.multi_reduction <add>, %111, %cst_34 [1] : vector<16x64xf32> to vector<16xf32>
    %113 = vector.shape_cast %112 : vector<16xf32> to vector<16x1xf32>
    %cst_35 = arith.constant 6.400000e+01 : f32
    %114 = vector.broadcast %cst_35 : f32 to vector<16x1xf32>
    %115 = arith.divf %113, %114 : vector<16x1xf32>
    %116 = vector.broadcast %108 : vector<16x1xf32> to vector<16x64xf32>
    %117 = arith.subf %102, %116 : vector<16x64xf32>
    %cst_36 = arith.constant 9.99999974E-6 : f32
    %118 = vector.broadcast %cst_36 : f32 to vector<16x1xf32>
    %119 = arith.addf %115, %118 : vector<16x1xf32>
    %120 = math.rsqrt %119 : vector<16x1xf32>
    %121 = vector.broadcast %120 : vector<16x1xf32> to vector<16x64xf32>
    %122 = arith.mulf %117, %121 : vector<16x64xf32>
    %123 = vector.broadcast %103 : vector<1x64xf32> to vector<16x64xf32>
    %124 = arith.mulf %122, %123 : vector<16x64xf32>
    %125 = vector.broadcast %104 : vector<1x64xf32> to vector<16x64xf32>
    %126 = arith.addf %124, %125 : vector<16x64xf32>
    %127 = arith.truncf %126 : vector<16x64xf32> to vector<16x64xbf16>
    %c0_37 = arith.constant 0 : index
    %c0_38 = arith.constant 0 : index
    %128 = vector.load %arg8[%c0_37, %c0_38] : memref<64x256xbf16, #tpu.memory_space<vmem>>, vector<64x256xbf16>
    %cst_39 = arith.constant dense<0.000000e+00> : vector<16x256xf32>
    %129 = tpu.matmul %127, %128, %cst_39 {dimension_numbers = #tpu.dot_dimension_numbers<[1], [0], [0], [1], [0, 0, 1, 1], [], []>} : vector<16x64xbf16>, vector<64x256xbf16>, vector<16x256xf32> -> vector<16x256xf32>
    %c0_40 = arith.constant 0 : index
    %c0_41 = arith.constant 0 : index
    %130 = vector.load %arg9[%c0_40, %c0_41] : memref<1x256xf32, #tpu.memory_space<vmem>>, vector<1x256xf32>
    %131 = vector.broadcast %130 : vector<1x256xf32> to vector<16x256xf32>
    %132 = arith.addf %129, %131 : vector<16x256xf32>
    %cst_42 = arith.constant 0.000000e+00 : f32
    %133 = vector.broadcast %cst_42 : f32 to vector<16x256xf32>
    %134 = arith.maximumf %132, %133 : vector<16x256xf32>
    %135 = arith.truncf %134 : vector<16x256xf32> to vector<16x256xbf16>
    %c0_43 = arith.constant 0 : index
    %c0_44 = arith.constant 0 : index
    %136 = vector.load %arg10[%c0_43, %c0_44] : memref<256x64xbf16, #tpu.memory_space<vmem>>, vector<256x64xbf16>
    %cst_45 = arith.constant dense<0.000000e+00> : vector<16x64xf32>
    %137 = tpu.matmul %135, %136, %cst_45 {dimension_numbers = #tpu.dot_dimension_numbers<[1], [0], [0], [1], [0, 0, 1, 1], [], []>} : vector<16x256xbf16>, vector<256x64xbf16>, vector<16x64xf32> -> vector<16x64xf32>
    %c0_46 = arith.constant 0 : index
    %c0_47 = arith.constant 0 : index
    %138 = vector.load %arg11[%c0_46, %c0_47] : memref<1x64xf32, #tpu.memory_space<vmem>>, vector<1x64xf32>
    %139 = vector.broadcast %138 : vector<1x64xf32> to vector<16x64xf32>
    %140 = arith.addf %137, %139 : vector<16x64xf32>
    %141 = arith.addf %126, %140 : vector<16x64xf32>
    %c0_48 = arith.constant 0 : index
    %c0_49 = arith.constant 0 : index
    %142 = vector.load %arg12[%c0_48, %c0_49] : memref<1x64xf32, #tpu.memory_space<vmem>>, vector<1x64xf32>
    %c0_50 = arith.constant 0 : index
    %c0_51 = arith.constant 0 : index
    %143 = vector.load %arg13[%c0_50, %c0_51] : memref<1x64xf32, #tpu.memory_space<vmem>>, vector<1x64xf32>
    %cst_52 = arith.constant dense<0.000000e+00> : vector<16xf32>
    %144 = vector.multi_reduction <add>, %141, %cst_52 [1] : vector<16x64xf32> to vector<16xf32>
    %145 = vector.shape_cast %144 : vector<16xf32> to vector<16x1xf32>
    %cst_53 = arith.constant 6.400000e+01 : f32
    %146 = vector.broadcast %cst_53 : f32 to vector<16x1xf32>
    %147 = arith.divf %145, %146 : vector<16x1xf32>
    %148 = vector.broadcast %147 : vector<16x1xf32> to vector<16x64xf32>
    %149 = arith.subf %141, %148 : vector<16x64xf32>
    %150 = arith.mulf %149, %149 : vector<16x64xf32>
    %cst_54 = arith.constant dense<0.000000e+00> : vector<16xf32>
    %151 = vector.multi_reduction <add>, %150, %cst_54 [1] : vector<16x64xf32> to vector<16xf32>
    %152 = vector.shape_cast %151 : vector<16xf32> to vector<16x1xf32>
    %cst_55 = arith.constant 6.400000e+01 : f32
    %153 = vector.broadcast %cst_55 : f32 to vector<16x1xf32>
    %154 = arith.divf %152, %153 : vector<16x1xf32>
    %155 = vector.broadcast %147 : vector<16x1xf32> to vector<16x64xf32>
    %156 = arith.subf %141, %155 : vector<16x64xf32>
    %cst_56 = arith.constant 9.99999974E-6 : f32
    %157 = vector.broadcast %cst_56 : f32 to vector<16x1xf32>
    %158 = arith.addf %154, %157 : vector<16x1xf32>
    %159 = math.rsqrt %158 : vector<16x1xf32>
    %160 = vector.broadcast %159 : vector<16x1xf32> to vector<16x64xf32>
    %161 = arith.mulf %156, %160 : vector<16x64xf32>
    %162 = vector.broadcast %142 : vector<1x64xf32> to vector<16x64xf32>
    %163 = arith.mulf %161, %162 : vector<16x64xf32>
    %164 = vector.broadcast %143 : vector<1x64xf32> to vector<16x64xf32>
    %165 = arith.addf %163, %164 : vector<16x64xf32>
    %c0_57 = arith.constant 0 : index
    %c0_58 = arith.constant 0 : index
    %166 = vector.load %arg14[%c0_57, %c0_58] : memref<16x64xf32, #tpu.memory_space<vmem>>, vector<16x64xf32>
    tpu.vector_store %arg14[%c0_57, %c0_58], %165 {strides = array<i32>} : memref<16x64xf32, #tpu.memory_space<vmem>>, vector<16x64xf32>,
    return
  }
  func.func @transform_0(%arg0: i32) -> (i32, i32) {
    %c0_i32 = arith.constant 0 : i32
    %c0_i32_0 = arith.constant 0 : i32
    return %arg0, %c0_i32 : i32, i32
  }
  func.func @transform_1(%arg0: i32) -> (i32, i32) {
    %c0_i32 = arith.constant 0 : i32
    %c0_i32_0 = arith.constant 0 : i32
    %c0_i32_1 = arith.constant 0 : i32
    return %c0_i32, %c0_i32_0 : i32, i32
  }
  func.func @transform_2(%arg0: i32) -> (i32, i32) {
    %c0_i32 = arith.constant 0 : i32
    %c0_i32_0 = arith.constant 0 : i32
    %c0_i32_1 = arith.constant 0 : i32
    return %c0_i32, %c0_i32_0 : i32, i32
  }
  func.func @transform_3(%arg0: i32) -> (i32, i32) {
    %c0_i32 = arith.constant 0 : i32
    %c0_i32_0 = arith.constant 0 : i32
    %c0_i32_1 = arith.constant 0 : i32
    return %c0_i32, %c0_i32_0 : i32, i32
  }
  func.func @transform_4(%arg0: i32) -> (i32, i32) {
    %c0_i32 = arith.constant 0 : i32
    %c0_i32_0 = arith.constant 0 : i32
    %c0_i32_1 = arith.constant 0 : i32
    return %c0_i32, %c0_i32_0 : i32, i32
  }
  func.func @transform_5(%arg0: i32) -> (i32, i32) {
    %c0_i32 = arith.constant 0 : i32
    %c0_i32_0 = arith.constant 0 : i32
    %c0_i32_1 = arith.constant 0 : i32
    return %c0_i32, %c0_i32_0 : i32, i32
  }
  func.func @transform_6(%arg0: i32) -> (i32, i32) {
    %c0_i32 = arith.constant 0 : i32
    %c0_i32_0 = arith.constant 0 : i32
    %c0_i32_1 = arith.constant 0 : i32
    return %c0_i32, %c0_i32_0 : i32, i32
  }
  func.func @transform_7(%arg0: i32) -> (i32, i32) {
    %c0_i32 = arith.constant 0 : i32
    %c0_i32_0 = arith.constant 0 : i32
    %c0_i32_1 = arith.constant 0 : i32
    return %c0_i32, %c0_i32_0 : i32, i32
  }
  func.func @transform_8(%arg0: i32) -> (i32, i32) {
    %c0_i32 = arith.constant 0 : i32
    %c0_i32_0 = arith.constant 0 : i32
    %c0_i32_1 = arith.constant 0 : i32
    return %c0_i32, %c0_i32_0 : i32, i32
  }
  func.func @transform_9(%arg0: i32) -> (i32, i32) {
    %c0_i32 = arith.constant 0 : i32
    %c0_i32_0 = arith.constant 0 : i32
    %c0_i32_1 = arith.constant 0 : i32
    return %c0_i32, %c0_i32_0 : i32, i32
  }
  func.func @transform_10(%arg0: i32) -> (i32, i32) {
    %c0_i32 = arith.constant 0 : i32
    %c0_i32_0 = arith.constant 0 : i32
    %c0_i32_1 = arith.constant 0 : i32
    return %c0_i32, %c0_i32_0 : i32, i32
  }
  func.func @transform_11(%arg0: i32) -> (i32, i32) {
    %c0_i32 = arith.constant 0 : i32
    %c0_i32_0 = arith.constant 0 : i32
    %c0_i32_1 = arith.constant 0 : i32
    return %c0_i32, %c0_i32_0 : i32, i32
  }
  func.func @transform_12(%arg0: i32) -> (i32, i32) {
    %c0_i32 = arith.constant 0 : i32
    %c0_i32_0 = arith.constant 0 : i32
    %c0_i32_1 = arith.constant 0 : i32
    return %c0_i32, %c0_i32_0 : i32, i32
  }
  func.func @transform_13(%arg0: i32) -> (i32, i32) {
    %c0_i32 = arith.constant 0 : i32
    %c0_i32_0 = arith.constant 0 : i32
    return %arg0, %c0_i32 : i32, i32
  }
}

</mosaic_0001>

<llo_original>
// kernel: tpu_custom_call.1
$region0: #{tpu_custom_call.1}
  #allocation0 [shape = 'u32[]', space=smem, size = 0x4, offset = 0x4, fixed_abs, tag = 'smem constant byte address 0x4 - core index']
  #allocation1 [shape = 'u32[144,128]{1,0:T(1,128)}', space=vmem, size = 0x12000, scoped, tag = 'internal scratch']
  %s0 = inlined_call_operand.vmem [shape: f32[16,64], index: 0, kind: input, shape index: {}]
  %s1 = inlined_call_operand.vmem [shape: bf16[64,192], index: 1, kind: input, shape index: {}]
  %s2 = inlined_call_operand.vmem [shape: f32[1,192], index: 2, kind: input, shape index: {}]
  %s3 = inlined_call_operand.vmem [shape: bf16[64,64], index: 3, kind: input, shape index: {}]
  %s4 = inlined_call_operand.vmem [shape: f32[1,64], index: 4, kind: input, shape index: {}]
  %s5 = inlined_call_operand.vmem [shape: f32[1,64], index: 5, kind: input, shape index: {}]
  %s6 = inlined_call_operand.vmem [shape: f32[1,64], index: 6, kind: input, shape index: {}]
  %s7 = inlined_call_operand.vmem [shape: bf16[64,256], index: 7, kind: input, shape index: {}]
  %s8 = inlined_call_operand.vmem [shape: f32[1,256], index: 8, kind: input, shape index: {}]
  %s9 = inlined_call_operand.vmem [shape: bf16[256,64], index: 9, kind: input, shape index: {}]
  %s10 = inlined_call_operand.vmem [shape: f32[1,64], index: 10, kind: input, shape index: {}]
  %s11 = inlined_call_operand.vmem [shape: f32[1,64], index: 11, kind: input, shape index: {}]
  %s12 = inlined_call_operand.vmem [shape: f32[1,64], index: 12, kind: input, shape index: {}]
  %s13 = inlined_call_operand.hbm [shape: f32[16,64], index: 13, kind: output, shape index: {}]
  %s14 = sld [smem:[#allocation0]]
  $region62: #{tpu_custom_call.1} parent=0
    _
  %s16 = ssub.s32 1, %s14
  %s17 = scalar_select 0, %s16, %s14
  $region1: #{tpu_custom_call.1} parent=0
    #allocation2 [shape = 'u8[8192]{0}', space=vmem, size = 0x2000, scoped, tag = 'output window, operand 0, single buffered']
    #allocation3 [shape = 's32[1]{0}', space=sflag, size = 0x4, scoped, tag = 'scoped memory for tpu_custom_call.1']
    %18 = vsyncpa [#allocation3], 0
    // Predicated region
    $region2: #{tpu_custom_call.1} parent=1 // pred_check
      _
    $region3: #{tpu_custom_call.1} parent=1 // pred_check_branch
      %20 = sbr.rel (0) target = $region5
    $region4: #{tpu_custom_call.1} parent=1 // pred_region
      _
    $region5: #{tpu_custom_call.1} parent=1 // pred_fallthru
      _
    // Predicated region
    $region6: #{tpu_custom_call.1} parent=1 // pred_check
      _
    $region7: #{tpu_custom_call.1} parent=1 // pred_check_branch
      %22 = sbr.rel (0) target = $region9
    $region8: #{tpu_custom_call.1} parent=1 // pred_region
      _
    $region9: #{tpu_custom_call.1} parent=1 // pred_fallthru
      _
    // Predicated region
    $region10: #{tpu_custom_call.1} parent=1 // pred_check
      _
    $region11: #{tpu_custom_call.1} parent=1 // pred_check_branch
      %24 = sbr.rel (0) target = $region13
    $region12: #{tpu_custom_call.1} parent=1 // pred_region
      _
    $region13: #{tpu_custom_call.1} parent=1 // pred_fallthru
      _
    // Predicated region
    $region14: #{tpu_custom_call.1} parent=1 // pred_check
      _
    $region15: #{tpu_custom_call.1} parent=1 // pred_check_branch
      %26 = sbr.rel (0) target = $region17
    $region16: #{tpu_custom_call.1} parent=1 // pred_region
      _
    $region17: #{tpu_custom_call.1} parent=1 // pred_fallthru
      _
    // Predicated region
    $region18: #{tpu_custom_call.1} parent=1 // pred_check
      _
    $region19: #{tpu_custom_call.1} parent=1 // pred_check_branch
      %28 = sbr.rel (0) target = $region21
    $region20: #{tpu_custom_call.1} parent=1 // pred_region
      _
    $region21: #{tpu_custom_call.1} parent=1 // pred_fallthru
      _
    // Predicated region
    $region22: #{tpu_custom_call.1} parent=1 // pred_check
      _
    $region23: #{tpu_custom_call.1} parent=1 // pred_check_branch
      %30 = sbr.rel (0) target = $region25
    $region24: #{tpu_custom_call.1} parent=1 // pred_region
      _
    $region25: #{tpu_custom_call.1} parent=1 // pred_fallthru
      _
    // Predicated region
    $region26: #{tpu_custom_call.1} parent=1 // pred_check
      _
    $region27: #{tpu_custom_call.1} parent=1 // pred_check_branch
      %32 = sbr.rel (0) target = $region29
    $region28: #{tpu_custom_call.1} parent=1 // pred_region
      _
    $region29: #{tpu_custom_call.1} parent=1 // pred_fallthru
      _
    // Predicated region
    $region30: #{tpu_custom_call.1} parent=1 // pred_check
      _
    $region31: #{tpu_custom_call.1} parent=1 // pred_check_branch
      %34 = sbr.rel (0) target = $region33
    $region32: #{tpu_custom_call.1} parent=1 // pred_region
      _
    $region33: #{tpu_custom_call.1} parent=1 // pred_fallthru
      _
    // Predicated region
    $region34: #{tpu_custom_call.1} parent=1 // pred_check
      _
    $region35: #{tpu_custom_call.1} parent=1 // pred_check_branch
      %36 = sbr.rel (0) target = $region37
    $region36: #{tpu_custom_call.1} parent=1 // pred_region
      _
    $region37: #{tpu_custom_call.1} parent=1 // pred_fallthru
      _
    // Predicated region
    $region38: #{tpu_custom_call.1} parent=1 // pred_check
      _
    $region39: #{tpu_custom_call.1} parent=1 // pred_check_branch
      %38 = sbr.rel (0) target = $region41
    $region40: #{tpu_custom_call.1} parent=1 // pred_region
      _
    $region41: #{tpu_custom_call.1} parent=1 // pred_fallthru
      _
    // Predicated region
    $region42: #{tpu_custom_call.1} parent=1 // pred_check
      _
    $region43: #{tpu_custom_call.1} parent=1 // pred_check_branch
      %40 = sbr.rel (0) target = $region45
    $region44: #{tpu_custom_call.1} parent=1 // pred_region
      _
    $region45: #{tpu_custom_call.1} parent=1 // pred_fallthru
      _
    // Predicated region
    $region46: #{tpu_custom_call.1} parent=1 // pred_check
      _
    $region47: #{tpu_custom_call.1} parent=1 // pred_check_branch
      %42 = sbr.rel (0) target = $region49
    $region48: #{tpu_custom_call.1} parent=1 // pred_region
      _
    $region49: #{tpu_custom_call.1} parent=1 // pred_fallthru
      _
    // Predicated region
    $region50: #{tpu_custom_call.1} parent=1 // pred_check
      _
    $region51: #{tpu_custom_call.1} parent=1 // pred_check_branch
      %44 = sbr.rel (0) target = $region53
    $region52: #{tpu_custom_call.1} parent=1 // pred_region
      _
    $region53: #{tpu_custom_call.1} parent=1 // pred_fallthru
      _
    %v46 = vld [vmem:[%s0] sm:$0xff]
    %v47 = vld [vmem:[%s0 + $0x8] sm:$0xff]
    %v48 = vpack.c.bf16 %v47, %v46
    %v49 = vld [vmem:[%s1] sm:$0xff]
    %v50 = vld [vmem:[%s1 + $0x8] sm:$0xff]
    %v51 = vld [vmem:[%s1 + $0x10] sm:$0xff]
    %v52 = vld [vmem:[%s1 + $0x18] sm:$0xff]
    %v53 = vld [vmem:[%s1 + $0x20] sm:$0xff]
    %v54 = vld [vmem:[%s1 + $0x28] sm:$0xff]
    %v55 = vld [vmem:[%s1 + $0x30] sm:$0xff]
    %v56 = vld [vmem:[%s1 + $0x38] sm:$0xff]
    %v57 = vld [vmem:[%s2] sm:$0x3]
    %v59 = vlaneseq
    %v60 = vshrl.u32 %v59, 7
    %v61 = vsub.s32 0, %v60
    %v62 = vrot.slane %v57, %v61
    %v63 = vlaneseq
    %v64 = vshrl.u32 %v63, 7
    %v65 = vsub.s32 1, %v64
    %v66 = vrot.slane %v57, %v65
    %v77 = vunpack.c.l.b16 %v49
    %v78 = vunpack.c.h.b16 %v49
    %v79 = vunpack.c.l.b16 %v50
    %v80 = vunpack.c.h.b16 %v50
    %v81 = vunpack.c.l.b16 %v51
    %v82 = vunpack.c.h.b16 %v51
    %v83 = vunpack.c.l.b16 %v52
    %v84 = vunpack.c.h.b16 %v52
    %v85 = vunpack.c.l.b16 %v53
    %v86 = vunpack.c.h.b16 %v53
    %v87 = vunpack.c.l.b16 %v54
    %v88 = vunpack.c.h.b16 %v54
    %v89 = vunpack.c.l.b16 %v55
    %v90 = vunpack.c.h.b16 %v55
    %v91 = vunpack.c.l.b16 %v56
    %v92 = vunpack.c.h.b16 %v56
    %v93 = vpack.c.b16 %v79, %v77
    %v94 = vpack.c.b16 %v80, %v78
    %v95 = vpack.c.b16 %v83, %v81
    %v96 = vpack.c.b16 %v84, %v82
    %v97 = vpack.c.b16 %v87, %v85
    %v98 = vpack.c.b16 %v88, %v86
    %v99 = vpack.c.b16 %v91, %v89
    %v100 = vpack.c.b16 %v92, %v90
    %vm109 = vcmask 523264
    %v111 = vsel %vm109, %v48, 0
    %113 = vmatprep.subr.bf16.mxu0 %v94
    %114 = vmatpush1.bf16.msra.mxu0 %v93
    %115 = vmatprep.subr.bf16.mxu0 %v96
    %116 = vmatpush1.bf16.msra.mxu0 %v95
    %117 = vmatprep.subr.bf16.mxu0 %v98
    %118 = vmatpush1.bf16.msra.mxu0 %v97
    %119 = vmatprep.subr.bf16.mxu0 %v100
    %120 = vmatpush1.bf16.msra.mxu0 %v99
    %121 = vmatprep.subr.bf16.mxu0 0
    %122 = vmatpush1.bf16.msra.mxu0 0
    %123 = vmatprep.subr.bf16.mxu0 0
    %124 = vmatpush1.bf16.msra.mxu0 0
    %125 = vmatprep.subr.bf16.mxu0 0
    %126 = vmatpush1.bf16.msra.mxu0 0
    %127 = vmatprep.subr.bf16.mxu0 0
    %128 = vmatpush1.bf16.msra.mxu0 0
    %129 = vmatprep.subr.bf16.mxu0 0
    %130 = vmatpush1.bf16.msra.mxu0 0
    %131 = vmatprep.subr.bf16.mxu0 0
    %132 = vmatpush1.bf16.msra.mxu0 0
    %133 = vmatprep.subr.bf16.mxu0 0
    %134 = vmatpush1.bf16.msra.mxu0 0
    %135 = vmatprep.subr.bf16.mxu0 0
    %136 = vmatpush1.bf16.msra.mxu0 0
    %137 = vmatprep.subr.bf16.mxu0 0
    %138 = vmatpush1.bf16.msra.mxu0 0
    %139 = vmatprep.subr.bf16.mxu0 0
    %140 = vmatpush1.bf16.msra.mxu0 0
    %141 = vmatprep.subr.bf16.mxu0 0
    %142 = vmatpush1.bf16.msra.mxu0 0
    %143 = vmatprep.subr.bf16.mxu0 0
    %144 = vmatpush1.bf16.msra.mxu0 0
    %145 = vmatprep.mubr.bf16.mxu0 0
    %146 = vmatmul.mubr.bf16.gmra.mrb[0].mxu0 %v111
    %v147 = vpop.f32.mrb[0].mxu0
    %v148 = vadd.f32 %v62, %v147
    %v149 = vpop.f32.mrb[0].mxu0
    %v150 = vadd.f32 %v66, %v149
    %v151 = vpop.f32.mrb[0].mxu0
    %v152 = vadd.f32 %v62, %v151
    %v153 = vpop.f32.mrb[0].mxu0
    %v154 = vadd.f32 %v66, %v153
    %155 = vdwg.mxu0
    %v156 = vpack.c.bf16 %v148, %v148
    %v157 = vpack.c.bf16 %v152, %v152
    %v158 = vpack.c.bf16 %v150, %v150
    %v159 = vpack.c.bf16 %v154, %v154
    %161 = vrot.lane.b32.xlu0 %v156, 64
    %v162 = vpop.permute.xlu0 %161
    %vm163 = vcmask 130048
    %v165 = vsel %vm163, %v156, 0
    %v168 = vsel %vm163, %v162, 0
    %170 = vmatprep.subr.bf16.mxu0 0
    %171 = vmatpush1.bf16.xpose.msra.mxu0 %v168
    %172 = vmatprep.subr.bf16.mxu0 0
    %173 = vmatpush1.bf16.xpose.msra.mxu0 0
    %174 = vmatprep.subr.bf16.mxu0 0
    %175 = vmatpush1.bf16.xpose.msra.mxu0 0
    %176 = vmatprep.subr.bf16.mxu0 0
    %177 = vmatpush1.bf16.xpose.msra.mxu0 0
    %178 = vmatprep.subr.bf16.mxu0 0
    %179 = vmatpush1.bf16.xpose.msra.mxu0 0
    %180 = vmatprep.subr.bf16.mxu0 0
    %181 = vmatpush1.bf16.xpose.msra.mxu0 0
    %182 = vmatprep.subr.bf16.mxu0 0
    %183 = vmatpush1.bf16.xpose.msra.mxu0 0
    %184 = vmatprep.subr.bf16.mxu0 0
    %185 = vmatpush1.bf16.xpose.msra.mxu0 0
    %186 = vmatprep.subr.bf16.mxu0 0
    %187 = vmatpush1.bf16.xpose.msra.mxu0 0
    %188 = vmatprep.subr.bf16.mxu0 0
    %189 = vmatpush1.bf16.xpose.msra.mxu0 0
    %190 = vmatprep.subr.bf16.mxu0 0
    %191 = vmatpush1.bf16.xpose.msra.mxu0 0
    %192 = vmatprep.subr.bf16.mxu0 0
    %193 = vmatpush1.bf16.xpose.msra.mxu0 0
    %194 = vmatprep.subr.bf16.mxu0 0
    %195 = vmatpush1.bf16.xpose.msra.mxu0 0
    %196 = vmatprep.subr.bf16.mxu0 0
    %197 = vmatpush1.bf16.xpose.msra.mxu0 0
    %198 = vmatprep.subr.bf16.mxu0 0
    %199 = vmatpush1.bf16.xpose.msra.mxu0 0
    %200 = vmatprep.subr.bf16.mxu0 0
    %201 = vmatpush1.bf16.xpose.msra.mxu0 0
    %202 = vmatprep.mubr.bf16.mxu0 0
    %203 = vmatmul.mubr.bf16.gmra.mrb[0].mxu0 %v165
    %v204 = vpop.f32.mrb[0].mxu0
    %v205 = vadd.f32 0.0, %v204
    %v206 = vpop.f32.mrb[0].mxu0
    %v207 = vpop.f32.mrb[0].mxu0
    %v208 = vpop.f32.mrb[0].mxu0
    %209 = vdwg.mxu0
    %211 = vrot.lane.b32.xlu0 %v157, 64
    %v212 = vpop.permute.xlu0 %211
    %v214 = vsel %vm163, %v157, 0
    %v217 = vsel %vm163, %v212, 0
    %219 = vmatprep.subr.bf16.mxu0 0
    %220 = vmatpush1.bf16.xpose.msra.mxu0 %v217
    %221 = vmatprep.subr.bf16.mxu0 0
    %222 = vmatpush1.bf16.xpose.msra.mxu0 0
    %223 = vmatprep.subr.bf16.mxu0 0
    %224 = vmatpush1.bf16.xpose.msra.mxu0 0
    %225 = vmatprep.subr.bf16.mxu0 0
    %226 = vmatpush1.bf16.xpose.msra.mxu0 0
    %227 = vmatprep.subr.bf16.mxu0 0
    %228 = vmatpush1.bf16.xpose.msra.mxu0 0
    %229 = vmatprep.subr.bf16.mxu0 0
    %230 = vmatpush1.bf16.xpose.msra.mxu0 0
    %231 = vmatprep.subr.bf16.mxu0 0
    %232 = vmatpush1.bf16.xpose.msra.mxu0 0
    %233 = vmatprep.subr.bf16.mxu0 0
    %234 = vmatpush1.bf16.xpose.msra.mxu0 0
    %235 = vmatprep.subr.bf16.mxu0 0
    %236 = vmatpush1.bf16.xpose.msra.mxu0 0
    %237 = vmatprep.subr.bf16.mxu0 0
    %238 = vmatpush1.bf16.xpose.msra.mxu0 0
    %239 = vmatprep.subr.bf16.mxu0 0
    %240 = vmatpush1.bf16.xpose.msra.mxu0 0
    %241 = vmatprep.subr.bf16.mxu0 0
    %242 = vmatpush1.bf16.xpose.msra.mxu0 0
    %243 = vmatprep.subr.bf16.mxu0 0
    %244 = vmatpush1.bf16.xpose.msra.mxu0 0
    %245 = vmatprep.subr.bf16.mxu0 0
    %246 = vmatpush1.bf16.xpose.msra.mxu0 0
    %247 = vmatprep.subr.bf16.mxu0 0
    %248 = vmatpush1.bf16.xpose.msra.mxu0 0
    %249 = vmatprep.subr.bf16.mxu0 0
    %250 = vmatpush1.bf16.xpose.msra.mxu0 0
    %251 = vmatprep.mubr.bf16.mxu0 0
    %252 = vmatmul.mubr.bf16.gmra.mrb[0].mxu0 %v214
    %v253 = vpop.f32.mrb[0].mxu0
    %v254 = vadd.f32 0.0, %v253
    %v255 = vpop.f32.mrb[0].mxu0
    %v256 = vpop.f32.mrb[0].mxu0
    %v257 = vpop.f32.mrb[0].mxu0
    %258 = vdwg.mxu0
    %v259 = vmul.f32 %v205, 0.25
    %v260 = vmul.f32 %v254, 0.25
    %vm261 = vcmask 64512
    %v262 = vsel %vm261, %v259, -inf
    %263 = vmax.xlane.f32.xlu0 %v262
    %v264 = vpop.xlane.xlu0 %263
    %v265 = vsel %vm261, %v260, -inf
    %266 = vmax.xlane.f32.xlu0 %v265
    %v267 = vpop.xlane.xlu0 %266
    %v268 = vsub.f32 %v259, %v264
    %v269 = vsub.f32 %v260, %v267
    %v270 = vmul.f32 %v268, 1.442695
    %v271 = vpow.pop %v270
    %v272 = vmul.f32 %v269, 1.442695
    %v273 = vpow.pop %v272
    %v274 = vsel %vm261, %v271, 0.0
    %275 = vadd.xlane.f32.xlu0 %v274
    %v276 = vpop.xlane.xlu0 %275
    %v277 = vsel %vm261, %v273, 0.0
    %278 = vadd.xlane.f32.xlu0 %v277
    %v279 = vpop.xlane.xlu0 %278
    %v280 = vrcp.pop %v276
    %v281 = vrcp.pop %v279
    %v282 = vmul.f32 %v271, %v280
    %v283 = vmul.f32 %v273, %v281
    %v284 = vpack.c.bf16 %v282, %v282
    %v285 = vpack.c.bf16 %v283, %v283
    %v287 = vsel %vm261, %v284, 0
    %vm289 = vcmask 1043456
    %v291 = vsel %vm289, %v158, 0
    %293 = vmatprep.subr.bf16.mxu0 0
    %294 = vmatpush1.bf16.msra.mxu0 %v291
    %295 = vmatprep.subr.bf16.mxu0 0
    %296 = vmatpush1.bf16.msra.mxu0 0
    %297 = vmatprep.subr.bf16.mxu0 0
    %298 = vmatpush1.bf16.msra.mxu0 0
    %299 = vmatprep.subr.bf16.mxu0 0
    %300 = vmatpush1.bf16.msra.mxu0 0
    %301 = vmatprep.subr.bf16.mxu0 0
    %302 = vmatpush1.bf16.msra.mxu0 0
    %303 = vmatprep.subr.bf16.mxu0 0
    %304 = vmatpush1.bf16.msra.mxu0 0
    %305 = vmatprep.subr.bf16.mxu0 0
    %306 = vmatpush1.bf16.msra.mxu0 0
    %307 = vmatprep.subr.bf16.mxu0 0
    %308 = vmatpush1.bf16.msra.mxu0 0
    %309 = vmatprep.subr.bf16.mxu0 0
    %310 = vmatpush1.bf16.msra.mxu0 0
    %311 = vmatprep.subr.bf16.mxu0 0
    %312 = vmatpush1.bf16.msra.mxu0 0
    %313 = vmatprep.subr.bf16.mxu0 0
    %314 = vmatpush1.bf16.msra.mxu0 0
    %315 = vmatprep.subr.bf16.mxu0 0
    %316 = vmatpush1.bf16.msra.mxu0 0
    %317 = vmatprep.subr.bf16.mxu0 0
    %318 = vmatpush1.bf16.msra.mxu0 0
    %319 = vmatprep.subr.bf16.mxu0 0
    %320 = vmatpush1.bf16.msra.mxu0 0
    %321 = vmatprep.subr.bf16.mxu0 0
    %322 = vmatpush1.bf16.msra.mxu0 0
    %323 = vmatprep.subr.bf16.mxu0 0
    %324 = vmatpush1.bf16.msra.mxu0 0
    %325 = vmatprep.mubr.bf16.mxu0 0
    %326 = vmatmul.mubr.bf16.gmra.mrb[0].mxu0 %v287
    %v327 = vpop.f32.mrb[0].mxu0
    %v328 = vadd.f32 0.0, %v327
    %v329 = vpop.f32.mrb[0].mxu0
    %v330 = vpop.f32.mrb[0].mxu0
    %v331 = vpop.f32.mrb[0].mxu0
    %332 = vdwg.mxu0
    %v334 = vsel %vm261, %v285, 0
    %v337 = vsel %vm289, %v159, 0
    %339 = vmatprep.subr.bf16.mxu0 0
    %340 = vmatpush1.bf16.msra.mxu0 %v337
    %341 = vmatprep.subr.bf16.mxu0 0
    %342 = vmatpush1.bf16.msra.mxu0 0
    %343 = vmatprep.subr.bf16.mxu0 0
    %344 = vmatpush1.bf16.msra.mxu0 0
    %345 = vmatprep.subr.bf16.mxu0 0
    %346 = vmatpush1.bf16.msra.mxu0 0
    %347 = vmatprep.subr.bf16.mxu0 0
    %348 = vmatpush1.bf16.msra.mxu0 0
    %349 = vmatprep.subr.bf16.mxu0 0
    %350 = vmatpush1.bf16.msra.mxu0 0
    %351 = vmatprep.subr.bf16.mxu0 0
    %352 = vmatpush1.bf16.msra.mxu0 0
    %353 = vmatprep.subr.bf16.mxu0 0
    %354 = vmatpush1.bf16.msra.mxu0 0
    %355 = vmatprep.subr.bf16.mxu0 0
    %356 = vmatpush1.bf16.msra.mxu0 0
    %357 = vmatprep.subr.bf16.mxu0 0
    %358 = vmatpush1.bf16.msra.mxu0 0
    %359 = vmatprep.subr.bf16.mxu0 0
    %360 = vmatpush1.bf16.msra.mxu0 0
    %361 = vmatprep.subr.bf16.mxu0 0
    %362 = vmatpush1.bf16.msra.mxu0 0
    %363 = vmatprep.subr.bf16.mxu0 0
    %364 = vmatpush1.bf16.msra.mxu0 0
    %365 = vmatprep.subr.bf16.mxu0 0
    %366 = vmatpush1.bf16.msra.mxu0 0
    %367 = vmatprep.subr.bf16.mxu0 0
    %368 = vmatpush1.bf16.msra.mxu0 0
    %369 = vmatprep.subr.bf16.mxu0 0
    %370 = vmatpush1.bf16.msra.mxu0 0
    %371 = vmatprep.mubr.bf16.mxu0 0
    %372 = vmatmul.mubr.bf16.gmra.mrb[0].mxu0 %v334
    %v373 = vpop.f32.mrb[0].mxu0
    %v374 = vadd.f32 0.0, %v373
    %v375 = vpop.f32.mrb[0].mxu0
    %v376 = vpop.f32.mrb[0].mxu0
    %v377 = vpop.f32.mrb[0].mxu0
    %378 = vdwg.mxu0
    %379 = vrot.lane.b32.xlu0 %v156, 112
    %v380 = vpop.permute.xlu0 %379
    %381 = vrot.lane.b32.xlu0 %v156, 48
    %v382 = vpop.permute.xlu0 %381
    %v384 = vsel %vm163, %v380, 0
    %v387 = vsel %vm163, %v382, 0
    %389 = vmatprep.subr.bf16.mxu0 0
    %390 = vmatpush1.bf16.xpose.msra.mxu0 %v387
    %391 = vmatprep.subr.bf16.mxu0 0
    %392 = vmatpush1.bf16.xpose.msra.mxu0 0
    %393 = vmatprep.subr.bf16.mxu0 0
    %394 = vmatpush1.bf16.xpose.msra.mxu0 0
    %395 = vmatprep.subr.bf16.mxu0 0
    %396 = vmatpush1.bf16.xpose.msra.mxu0 0
    %397 = vmatprep.subr.bf16.mxu0 0
    %398 = vmatpush1.bf16.xpose.msra.mxu0 0
    %399 = vmatprep.subr.bf16.mxu0 0
    %400 = vmatpush1.bf16.xpose.msra.mxu0 0
    %401 = vmatprep.subr.bf16.mxu0 0
    %402 = vmatpush1.bf16.xpose.msra.mxu0 0
    %403 = vmatprep.subr.bf16.mxu0 0
    %404 = vmatpush1.bf16.xpose.msra.mxu0 0
    %405 = vmatprep.subr.bf16.mxu0 0
    %406 = vmatpush1.bf16.xpose.msra.mxu0 0
    %407 = vmatprep.subr.bf16.mxu0 0
    %408 = vmatpush1.bf16.xpose.msra.mxu0 0
    %409 = vmatprep.subr.bf16.mxu0 0
    %410 = vmatpush1.bf16.xpose.msra.mxu0 0
    %411 = vmatprep.subr.bf16.mxu0 0
    %412 = vmatpush1.bf16.xpose.msra.mxu0 0
    %413 = vmatprep.subr.bf16.mxu0 0
    %414 = vmatpush1.bf16.xpose.msra.mxu0 0
    %415 = vmatprep.subr.bf16.mxu0 0
    %416 = vmatpush1.bf16.xpose.msra.mxu0 0
    %417 = vmatprep.subr.bf16.mxu0 0
    %418 = vmatpush1.bf16.xpose.msra.mxu0 0
    %419 = vmatprep.subr.bf16.mxu0 0
    %420 = vmatpush1.bf16.xpose.msra.mxu0 0
    %421 = vmatprep.mubr.bf16.mxu0 0
    %422 = vmatmul.mubr.bf16.gmra.mrb[0].mxu0 %v384
    %v423 = vpop.f32.mrb[0].mxu0
    %v424 = vadd.f32 0.0, %v423
    %v425 = vpop.f32.mrb[0].mxu0
    %v426 = vpop.f32.mrb[0].mxu0
    %v427 = vpop.f32.mrb[0].mxu0
    %428 = vdwg.mxu0
    %429 = vrot.lane.b32.xlu0 %v157, 112
    %v430 = vpop.permute.xlu0 %429
    %431 = vrot.lane.b32.xlu0 %v157, 48
    %v432 = vpop.permute.xlu0 %431
    %v434 = vsel %vm163, %v430, 0
    %v437 = vsel %vm163, %v432, 0
    %439 = vmatprep.subr.bf16.mxu0 0
    %440 = vmatpush1.bf16.xpose.msra.mxu0 %v437
    %441 = vmatprep.subr.bf16.mxu0 0
    %442 = vmatpush1.bf16.xpose.msra.mxu0 0
    %443 = vmatprep.subr.bf16.mxu0 0
    %444 = vmatpush1.bf16.xpose.msra.mxu0 0
    %445 = vmatprep.subr.bf16.mxu0 0
    %446 = vmatpush1.bf16.xpose.msra.mxu0 0
    %447 = vmatprep.subr.bf16.mxu0 0
    %448 = vmatpush1.bf16.xpose.msra.mxu0 0
    %449 = vmatprep.subr.bf16.mxu0 0
    %450 = vmatpush1.bf16.xpose.msra.mxu0 0
    %451 = vmatprep.subr.bf16.mxu0 0
    %452 = vmatpush1.bf16.xpose.msra.mxu0 0
    %453 = vmatprep.subr.bf16.mxu0 0
    %454 = vmatpush1.bf16.xpose.msra.mxu0 0
    %455 = vmatprep.subr.bf16.mxu0 0
    %456 = vmatpush1.bf16.xpose.msra.mxu0 0
    %457 = vmatprep.subr.bf16.mxu0 0
    %458 = vmatpush1.bf16.xpose.msra.mxu0 0
    %459 = vmatprep.subr.bf16.mxu0 0
    %460 = vmatpush1.bf16.xpose.msra.mxu0 0
    %461 = vmatprep.subr.bf16.mxu0 0
    %462 = vmatpush1.bf16.xpose.msra.mxu0 0
    %463 = vmatprep.subr.bf16.mxu0 0
    %464 = vmatpush1.bf16.xpose.msra.mxu0 0
    %465 = vmatprep.subr.bf16.mxu0 0
    %466 = vmatpush1.bf16.xpose.msra.mxu0 0
    %467 = vmatprep.subr.bf16.mxu0 0
    %468 = vmatpush1.bf16.xpose.msra.mxu0 0
    %469 = vmatprep.subr.bf16.mxu0 0
    %470 = vmatpush1.bf16.xpose.msra.mxu0 0
    %471 = vmatprep.mubr.bf16.mxu0 0
    %472 = vmatmul.mubr.bf16.gmra.mrb[0].mxu0 %v434
    %v473 = vpop.f32.mrb[0].mxu0
    %v474 = vadd.f32 0.0, %v473
    %v475 = vpop.f32.mrb[0].mxu0
    %v476 = vpop.f32.mrb[0].mxu0
    %v477 = vpop.f32.mrb[0].mxu0
    %478 = vdwg.mxu0
    %v479 = vmul.f32 %v424, 0.25
    %v480 = vmul.f32 %v474, 0.25
    %v481 = vsel %vm261, %v479, -inf
    %482 = vmax.xlane.f32.xlu0 %v481
    %v483 = vpop.xlane.xlu0 %482
    %v484 = vsel %vm261, %v480, -inf
    %485 = vmax.xlane.f32.xlu0 %v484
    %v486 = vpop.xlane.xlu0 %485
    %v487 = vsub.f32 %v479, %v483
    %v488 = vsub.f32 %v480, %v486
    %v489 = vmul.f32 %v487, 1.442695
    %v490 = vpow.pop %v489
    %v491 = vmul.f32 %v488, 1.442695
    %v492 = vpow.pop %v491
    %v493 = vsel %vm261, %v490, 0.0
    %494 = vadd.xlane.f32.xlu0 %v493
    %v495 = vpop.xlane.xlu0 %494
    %v496 = vsel %vm261, %v492, 0.0
    %497 = vadd.xlane.f32.xlu0 %v496
    %v498 = vpop.xlane.xlu0 %497
    %v499 = vrcp.pop %v495
    %v500 = vrcp.pop %v498
    %v501 = vmul.f32 %v490, %v499
    %v502 = vmul.f32 %v492, %v500
    %v503 = vpack.c.bf16 %v501, %v501
    %v504 = vpack.c.bf16 %v502, %v502
    %506 = vrot.lane.b32.xlu0 %v158, 112
    %v507 = vpop.permute.xlu0 %506
    %v509 = vsel %vm261, %v503, 0
    %v512 = vsel %vm289, %v507, 0
    %514 = vmatprep.subr.bf16.mxu0 0
    %515 = vmatpush1.bf16.msra.mxu0 %v512
    %516 = vmatprep.subr.bf16.mxu0 0
    %517 = vmatpush1.bf16.msra.mxu0 0
    %518 = vmatprep.subr.bf16.mxu0 0
    %519 = vmatpush1.bf16.msra.mxu0 0
    %520 = vmatprep.subr.bf16.mxu0 0
    %521 = vmatpush1.bf16.msra.mxu0 0
    %522 = vmatprep.subr.bf16.mxu0 0
    %523 = vmatpush1.bf16.msra.mxu0 0
    %524 = vmatprep.subr.bf16.mxu0 0
    %525 = vmatpush1.bf16.msra.mxu0 0
    %526 = vmatprep.subr.bf16.mxu0 0
    %527 = vmatpush1.bf16.msra.mxu0 0
    %528 = vmatprep.subr.bf16.mxu0 0
    %529 = vmatpush1.bf16.msra.mxu0 0
    %530 = vmatprep.subr.bf16.mxu0 0
    %531 = vmatpush1.bf16.msra.mxu0 0
    %532 = vmatprep.subr.bf16.mxu0 0
    %533 = vmatpush1.bf16.msra.mxu0 0
    %534 = vmatprep.subr.bf16.mxu0 0
    %535 = vmatpush1.bf16.msra.mxu0 0
    %536 = vmatprep.subr.bf16.mxu0 0
    %537 = vmatpush1.bf16.msra.mxu0 0
    %538 = vmatprep.subr.bf16.mxu0 0
    %539 = vmatpush1.bf16.msra.mxu0 0
    %540 = vmatprep.subr.bf16.mxu0 0
    %541 = vmatpush1.bf16.msra.mxu0 0
    %542 = vmatprep.subr.bf16.mxu0 0
    %543 = vmatpush1.bf16.msra.mxu0 0
    %544 = vmatprep.subr.bf16.mxu0 0
    %545 = vmatpush1.bf16.msra.mxu0 0
    %546 = vmatprep.mubr.bf16.mxu0 0
    %547 = vmatmul.mubr.bf16.gmra.mrb[0].mxu0 %v509
    %v548 = vpop.f32.mrb[0].mxu0
    %v549 = vadd.f32 0.0, %v548
    %v550 = vpop.f32.mrb[0].mxu0
    %v551 = vpop.f32.mrb[0].mxu0
    %v552 = vpop.f32.mrb[0].mxu0
    %553 = vdwg.mxu0
    %555 = vrot.lane.b32.xlu0 %v159, 112
    %v556 = vpop.permute.xlu0 %555
    %v558 = vsel %vm261, %v504, 0
    %v561 = vsel %vm289, %v556, 0
    %563 = vmatprep.subr.bf16.mxu0 0
    %564 = vmatpush1.bf16.msra.mxu0 %v561
    %565 = vmatprep.subr.bf16.mxu0 0
    %566 = vmatpush1.bf16.msra.mxu0 0
    %567 = vmatprep.subr.bf16.mxu0 0
    %568 = vmatpush1.bf16.msra.mxu0 0
    %569 = vmatprep.subr.bf16.mxu0 0
    %570 = vmatpush1.bf16.msra.mxu0 0
    %571 = vmatprep.subr.bf16.mxu0 0
    %572 = vmatpush1.bf16.msra.mxu0 0
    %573 = vmatprep.subr.bf16.mxu0 0
    %574 = vmatpush1.bf16.msra.mxu0 0
    %575 = vmatprep.subr.bf16.mxu0 0
    %576 = vmatpush1.bf16.msra.mxu0 0
    %577 = vmatprep.subr.bf16.mxu0 0
    %578 = vmatpush1.bf16.msra.mxu0 0
    %579 = vmatprep.subr.bf16.mxu0 0
    %580 = vmatpush1.bf16.msra.mxu0 0
    %581 = vmatprep.subr.bf16.mxu0 0
    %582 = vmatpush1.bf16.msra.mxu0 0
    %583 = vmatprep.subr.bf16.mxu0 0
    %584 = vmatpush1.bf16.msra.mxu0 0
    %585 = vmatprep.subr.bf16.mxu0 0
    %586 = vmatpush1.bf16.msra.mxu0 0
    %587 = vmatprep.subr.bf16.mxu0 0
    %588 = vmatpush1.bf16.msra.mxu0 0
    %589 = vmatprep.subr.bf16.mxu0 0
    %590 = vmatpush1.bf16.msra.mxu0 0
    %591 = vmatprep.subr.bf16.mxu0 0
    %592 = vmatpush1.bf16.msra.mxu0 0
    %593 = vmatprep.subr.bf16.mxu0 0
    %594 = vmatpush1.bf16.msra.mxu0 0
    %595 = vmatprep.mubr.bf16.mxu0 0
    %596 = vmatmul.mubr.bf16.gmra.mrb[0].mxu0 %v558
    %v597 = vpop.f32.mrb[0].mxu0
    %v598 = vadd.f32 0.0, %v597
    %v599 = vpop.f32.mrb[0].mxu0
    %v600 = vpop.f32.mrb[0].mxu0
    %v601 = vpop.f32.mrb[0].mxu0
    %602 = vdwg.mxu0
    %603 = vrot.lane.b32.xlu0 %v156, 96
    %v604 = vpop.permute.xlu0 %603
    %605 = vrot.lane.b32.xlu0 %v156, 32
    %v606 = vpop.permute.xlu0 %605
    %v608 = vsel %vm163, %v604, 0
    %v611 = vsel %vm163, %v606, 0
    %613 = vmatprep.subr.bf16.mxu0 0
    %614 = vmatpush1.bf16.xpose.msra.mxu0 %v611
    %615 = vmatprep.subr.bf16.mxu0 0
    %616 = vmatpush1.bf16.xpose.msra.mxu0 0
    %617 = vmatprep.subr.bf16.mxu0 0
    %618 = vmatpush1.bf16.xpose.msra.mxu0 0
    %619 = vmatprep.subr.bf16.mxu0 0
    %620 = vmatpush1.bf16.xpose.msra.mxu0 0
    %621 = vmatprep.subr.bf16.mxu0 0
    %622 = vmatpush1.bf16.xpose.msra.mxu0 0
    %623 = vmatprep.subr.bf16.mxu0 0
    %624 = vmatpush1.bf16.xpose.msra.mxu0 0
    %625 = vmatprep.subr.bf16.mxu0 0
    %626 = vmatpush1.bf16.xpose.msra.mxu0 0
    %627 = vmatprep.subr.bf16.mxu0 0
    %628 = vmatpush1.bf16.xpose.msra.mxu0 0
    %629 = vmatprep.subr.bf16.mxu0 0
    %630 = vmatpush1.bf16.xpose.msra.mxu0 0
    %631 = vmatprep.subr.bf16.mxu0 0
    %632 = vmatpush1.bf16.xpose.msra.mxu0 0
    %633 = vmatprep.subr.bf16.mxu0 0
    %634 = vmatpush1.bf16.xpose.msra.mxu0 0
    %635 = vmatprep.subr.bf16.mxu0 0
    %636 = vmatpush1.bf16.xpose.msra.mxu0 0
    %637 = vmatprep.subr.bf16.mxu0 0
    %638 = vmatpush1.bf16.xpose.msra.mxu0 0
    %639 = vmatprep.subr.bf16.mxu0 0
    %640 = vmatpush1.bf16.xpose.msra.mxu0 0
    %641 = vmatprep.subr.bf16.mxu0 0
    %642 = vmatpush1.bf16.xpose.msra.mxu0 0
    %643 = vmatprep.subr.bf16.mxu0 0
    %644 = vmatpush1.bf16.xpose.msra.mxu0 0
    %645 = vmatprep.mubr.bf16.mxu0 0
    %646 = vmatmul.mubr.bf16.gmra.mrb[0].mxu0 %v608
    %v647 = vpop.f32.mrb[0].mxu0
    %v648 = vadd.f32 0.0, %v647
    %v649 = vpop.f32.mrb[0].mxu0
    %v650 = vpop.f32.mrb[0].mxu0
    %v651 = vpop.f32.mrb[0].mxu0
    %652 = vdwg.mxu0
    %653 = vrot.lane.b32.xlu0 %v157, 96
    %v654 = vpop.permute.xlu0 %653
    %655 = vrot.lane.b32.xlu0 %v157, 32
    %v656 = vpop.permute.xlu0 %655
    %v658 = vsel %vm163, %v654, 0
    %v661 = vsel %vm163, %v656, 0
    %663 = vmatprep.subr.bf16.mxu0 0
    %664 = vmatpush1.bf16.xpose.msra.mxu0 %v661
    %665 = vmatprep.subr.bf16.mxu0 0
    %666 = vmatpush1.bf16.xpose.msra.mxu0 0
    %667 = vmatprep.subr.bf16.mxu0 0
    %668 = vmatpush1.bf16.xpose.msra.mxu0 0
    %669 = vmatprep.subr.bf16.mxu0 0
    %670 = vmatpush1.bf16.xpose.msra.mxu0 0
    %671 = vmatprep.subr.bf16.mxu0 0
    %672 = vmatpush1.bf16.xpose.msra.mxu0 0
    %673 = vmatprep.subr.bf16.mxu0 0
    %674 = vmatpush1.bf16.xpose.msra.mxu0 0
    %675 = vmatprep.subr.bf16.mxu0 0
    %676 = vmatpush1.bf16.xpose.msra.mxu0 0
    %677 = vmatprep.subr.bf16.mxu0 0
    %678 = vmatpush1.bf16.xpose.msra.mxu0 0
    %679 = vmatprep.subr.bf16.mxu0 0
    %680 = vmatpush1.bf16.xpose.msra.mxu0 0
    %681 = vmatprep.subr.bf16.mxu0 0
    %682 = vmatpush1.bf16.xpose.msra.mxu0 0
    %683 = vmatprep.subr.bf16.mxu0 0
    %684 = vmatpush1.bf16.xpose.msra.mxu0 0
    %685 = vmatprep.subr.bf16.mxu0 0
    %686 = vmatpush1.bf16.xpose.msra.mxu0 0
    %687 = vmatprep.subr.bf16.mxu0 0
    %688 = vmatpush1.bf16.xpose.msra.mxu0 0
    %689 = vmatprep.subr.bf16.mxu0 0
    %690 = vmatpush1.bf16.xpose.msra.mxu0 0
    %691 = vmatprep.subr.bf16.mxu0 0
    %692 = vmatpush1.bf16.xpose.msra.mxu0 0
    %693 = vmatprep.subr.bf16.mxu0 0
    %694 = vmatpush1.bf16.xpose.msra.mxu0 0
    %695 = vmatprep.mubr.bf16.mxu0 0
    %696 = vmatmul.mubr.bf16.gmra.mrb[0].mxu0 %v658
    %v697 = vpop.f32.mrb[0].mxu0
    %v698 = vadd.f32 0.0, %v697
    %v699 = vpop.f32.mrb[0].mxu0
    %v700 = vpop.f32.mrb[0].mxu0
    %v701 = vpop.f32.mrb[0].mxu0
    %702 = vdwg.mxu0
    %v703 = vmul.f32 %v648, 0.25
    %v704 = vmul.f32 %v698, 0.25
    %v705 = vsel %vm261, %v703, -inf
    %706 = vmax.xlane.f32.xlu0 %v705
    %v707 = vpop.xlane.xlu0 %706
    %v708 = vsel %vm261, %v704, -inf
    %709 = vmax.xlane.f32.xlu0 %v708
    %v710 = vpop.xlane.xlu0 %709
    %v711 = vsub.f32 %v703, %v707
    %v712 = vsub.f32 %v704, %v710
    %v713 = vmul.f32 %v711, 1.442695
    %v714 = vpow.pop %v713
    %v715 = vmul.f32 %v712, 1.442695
    %v716 = vpow.pop %v715
    %v717 = vsel %vm261, %v714, 0.0
    %718 = vadd.xlane.f32.xlu0 %v717
    %v719 = vpop.xlane.xlu0 %718
    %v720 = vsel %vm261, %v716, 0.0
    %721 = vadd.xlane.f32.xlu0 %v720
    %v722 = vpop.xlane.xlu0 %721
    %v723 = vrcp.pop %v719
    %v724 = vrcp.pop %v722
    %v725 = vmul.f32 %v714, %v723
    %v726 = vmul.f32 %v716, %v724
    %v727 = vpack.c.bf16 %v725, %v725
    %v728 = vpack.c.bf16 %v726, %v726
    %729 = vrot.lane.b32.xlu0 %v158, 96
    %v730 = vpop.permute.xlu0 %729
    %v732 = vsel %vm261, %v727, 0
    %v735 = vsel %vm289, %v730, 0
    %737 = vmatprep.subr.bf16.mxu0 0
    %738 = vmatpush1.bf16.msra.mxu0 %v735
    %739 = vmatprep.subr.bf16.mxu0 0
    %740 = vmatpush1.bf16.msra.mxu0 0
    %741 = vmatprep.subr.bf16.mxu0 0
    %742 = vmatpush1.bf16.msra.mxu0 0
    %743 = vmatprep.subr.bf16.mxu0 0
    %744 = vmatpush1.bf16.msra.mxu0 0
    %745 = vmatprep.subr.bf16.mxu0 0
    %746 = vmatpush1.bf16.msra.mxu0 0
    %747 = vmatprep.subr.bf16.mxu0 0
    %748 = vmatpush1.bf16.msra.mxu0 0
    %749 = vmatprep.subr.bf16.mxu0 0
    %750 = vmatpush1.bf16.msra.mxu0 0
    %751 = vmatprep.subr.bf16.mxu0 0
    %752 = vmatpush1.bf16.msra.mxu0 0
    %753 = vmatprep.subr.bf16.mxu0 0
    %754 = vmatpush1.bf16.msra.mxu0 0
    %755 = vmatprep.subr.bf16.mxu0 0
    %756 = vmatpush1.bf16.msra.mxu0 0
    %757 = vmatprep.subr.bf16.mxu0 0
    %758 = vmatpush1.bf16.msra.mxu0 0
    %759 = vmatprep.subr.bf16.mxu0 0
    %760 = vmatpush1.bf16.msra.mxu0 0
    %761 = vmatprep.subr.bf16.mxu0 0
    %762 = vmatpush1.bf16.msra.mxu0 0
    %763 = vmatprep.subr.bf16.mxu0 0
    %764 = vmatpush1.bf16.msra.mxu0 0
    %765 = vmatprep.subr.bf16.mxu0 0
    %766 = vmatpush1.bf16.msra.mxu0 0
    %767 = vmatprep.subr.bf16.mxu0 0
    %768 = vmatpush1.bf16.msra.mxu0 0
    %769 = vmatprep.mubr.bf16.mxu0 0
    %770 = vmatmul.mubr.bf16.gmra.mrb[0].mxu0 %v732
    %v771 = vpop.f32.mrb[0].mxu0
    %v772 = vadd.f32 0.0, %v771
    %v773 = vpop.f32.mrb[0].mxu0
    %v774 = vpop.f32.mrb[0].mxu0
    %v775 = vpop.f32.mrb[0].mxu0
    %776 = vdwg.mxu0
    %777 = vrot.lane.b32.xlu0 %v159, 96
    %v778 = vpop.permute.xlu0 %777
    %v780 = vsel %vm261, %v728, 0
    %v783 = vsel %vm289, %v778, 0
    %785 = vmatprep.subr.bf16.mxu0 0
    %786 = vmatpush1.bf16.msra.mxu0 %v783
    %787 = vmatprep.subr.bf16.mxu0 0
    %788 = vmatpush1.bf16.msra.mxu0 0
    %789 = vmatprep.subr.bf16.mxu0 0
    %790 = vmatpush1.bf16.msra.mxu0 0
    %791 = vmatprep.subr.bf16.mxu0 0
    %792 = vmatpush1.bf16.msra.mxu0 0
    %793 = vmatprep.subr.bf16.mxu0 0
    %794 = vmatpush1.bf16.msra.mxu0 0
    %795 = vmatprep.subr.bf16.mxu0 0
    %796 = vmatpush1.bf16.msra.mxu0 0
    %797 = vmatprep.subr.bf16.mxu0 0
    %798 = vmatpush1.bf16.msra.mxu0 0
    %799 = vmatprep.subr.bf16.mxu0 0
    %800 = vmatpush1.bf16.msra.mxu0 0
    %801 = vmatprep.subr.bf16.mxu0 0
    %802 = vmatpush1.bf16.msra.mxu0 0
    %803 = vmatprep.subr.bf16.mxu0 0
    %804 = vmatpush1.bf16.msra.mxu0 0
    %805 = vmatprep.subr.bf16.mxu0 0
    %806 = vmatpush1.bf16.msra.mxu0 0
    %807 = vmatprep.subr.bf16.mxu0 0
    %808 = vmatpush1.bf16.msra.mxu0 0
    %809 = vmatprep.subr.bf16.mxu0 0
    %810 = vmatpush1.bf16.msra.mxu0 0
    %811 = vmatprep.subr.bf16.mxu0 0
    %812 = vmatpush1.bf16.msra.mxu0 0
    %813 = vmatprep.subr.bf16.mxu0 0
    %814 = vmatpush1.bf16.msra.mxu0 0
    %815 = vmatprep.subr.bf16.mxu0 0
    %816 = vmatpush1.bf16.msra.mxu0 0
    %817 = vmatprep.mubr.bf16.mxu0 0
    %818 = vmatmul.mubr.bf16.gmra.mrb[0].mxu0 %v780
    %v819 = vpop.f32.mrb[0].mxu0
    %v820 = vadd.f32 0.0, %v819
    %v821 = vpop.f32.mrb[0].mxu0
    %v822 = vpop.f32.mrb[0].mxu0
    %v823 = vpop.f32.mrb[0].mxu0
    %824 = vdwg.mxu0
    %825 = vrot.lane.b32.xlu0 %v156, 80
    %v826 = vpop.permute.xlu0 %825
    %827 = vrot.lane.b32.xlu0 %v156, 16
    %v828 = vpop.permute.xlu0 %827
    %v830 = vsel %vm163, %v826, 0
    %v833 = vsel %vm163, %v828, 0
    %835 = vmatprep.subr.bf16.mxu0 0
    %836 = vmatpush1.bf16.xpose.msra.mxu0 %v833
    %837 = vmatprep.subr.bf16.mxu0 0
    %838 = vmatpush1.bf16.xpose.msra.mxu0 0
    %839 = vmatprep.subr.bf16.mxu0 0
    %840 = vmatpush1.bf16.xpose.msra.mxu0 0
    %841 = vmatprep.subr.bf16.mxu0 0
    %842 = vmatpush1.bf16.xpose.msra.mxu0 0
    %843 = vmatprep.subr.bf16.mxu0 0
    %844 = vmatpush1.bf16.xpose.msra.mxu0 0
    %845 = vmatprep.subr.bf16.mxu0 0
    %846 = vmatpush1.bf16.xpose.msra.mxu0 0
    %847 = vmatprep.subr.bf16.mxu0 0
    %848 = vmatpush1.bf16.xpose.msra.mxu0 0
    %849 = vmatprep.subr.bf16.mxu0 0
    %850 = vmatpush1.bf16.xpose.msra.mxu0 0
    %851 = vmatprep.subr.bf16.mxu0 0
    %852 = vmatpush1.bf16.xpose.msra.mxu0 0
    %853 = vmatprep.subr.bf16.mxu0 0
    %854 = vmatpush1.bf16.xpose.msra.mxu0 0
    %855 = vmatprep.subr.bf16.mxu0 0
    %856 = vmatpush1.bf16.xpose.msra.mxu0 0
    %857 = vmatprep.subr.bf16.mxu0 0
    %858 = vmatpush1.bf16.xpose.msra.mxu0 0
    %859 = vmatprep.subr.bf16.mxu0 0
    %860 = vmatpush1.bf16.xpose.msra.mxu0 0
    %861 = vmatprep.subr.bf16.mxu0 0
    %862 = vmatpush1.bf16.xpose.msra.mxu0 0
    %863 = vmatprep.subr.bf16.mxu0 0
    %864 = vmatpush1.bf16.xpose.msra.mxu0 0
    %865 = vmatprep.subr.bf16.mxu0 0
    %866 = vmatpush1.bf16.xpose.msra.mxu0 0
    %867 = vmatprep.mubr.bf16.mxu0 0
    %868 = vmatmul.mubr.bf16.gmra.mrb[0].mxu0 %v830
    %v869 = vpop.f32.mrb[0].mxu0
    %v870 = vadd.f32 0.0, %v869
    %v871 = vpop.f32.mrb[0].mxu0
    %v872 = vpop.f32.mrb[0].mxu0
    %v873 = vpop.f32.mrb[0].mxu0
    %874 = vdwg.mxu0
    %875 = vrot.lane.b32.xlu0 %v157, 80
    %v876 = vpop.permute.xlu0 %875
    %877 = vrot.lane.b32.xlu0 %v157, 16
    %v878 = vpop.permute.xlu0 %877
    %v880 = vsel %vm163, %v876, 0
    %v883 = vsel %vm163, %v878, 0
    %885 = vmatprep.subr.bf16.mxu0 0
    %886 = vmatpush1.bf16.xpose.msra.mxu0 %v883
    %887 = vmatprep.subr.bf16.mxu0 0
    %888 = vmatpush1.bf16.xpose.msra.mxu0 0
    %889 = vmatprep.subr.bf16.mxu0 0
    %890 = vmatpush1.bf16.xpose.msra.mxu0 0
    %891 = vmatprep.subr.bf16.mxu0 0
    %892 = vmatpush1.bf16.xpose.msra.mxu0 0
    %893 = vmatprep.subr.bf16.mxu0 0
    %894 = vmatpush1.bf16.xpose.msra.mxu0 0
    %895 = vmatprep.subr.bf16.mxu0 0
    %896 = vmatpush1.bf16.xpose.msra.mxu0 0
    %897 = vmatprep.subr.bf16.mxu0 0
    %898 = vmatpush1.bf16.xpose.msra.mxu0 0
    %899 = vmatprep.subr.bf16.mxu0 0
    %900 = vmatpush1.bf16.xpose.msra.mxu0 0
    %901 = vmatprep.subr.bf16.mxu0 0
    %902 = vmatpush1.bf16.xpose.msra.mxu0 0
    %903 = vmatprep.subr.bf16.mxu0 0
    %904 = vmatpush1.bf16.xpose.msra.mxu0 0
    %905 = vmatprep.subr.bf16.mxu0 0
    %906 = vmatpush1.bf16.xpose.msra.mxu0 0
    %907 = vmatprep.subr.bf16.mxu0 0
    %908 = vmatpush1.bf16.xpose.msra.mxu0 0
    %909 = vmatprep.subr.bf16.mxu0 0
    %910 = vmatpush1.bf16.xpose.msra.mxu0 0
    %911 = vmatprep.subr.bf16.mxu0 0
    %912 = vmatpush1.bf16.xpose.msra.mxu0 0
    %913 = vmatprep.subr.bf16.mxu0 0
    %914 = vmatpush1.bf16.xpose.msra.mxu0 0
    %915 = vmatprep.subr.bf16.mxu0 0
    %916 = vmatpush1.bf16.xpose.msra.mxu0 0
    %917 = vmatprep.mubr.bf16.mxu0 0
    %918 = vmatmul.mubr.bf16.gmra.mrb[0].mxu0 %v880
    %v919 = vpop.f32.mrb[0].mxu0
    %v920 = vadd.f32 0.0, %v919
    %v921 = vpop.f32.mrb[0].mxu0
    %v922 = vpop.f32.mrb[0].mxu0
    %v923 = vpop.f32.mrb[0].mxu0
    %924 = vdwg.mxu0
    %v925 = vmul.f32 %v870, 0.25
    %v926 = vmul.f32 %v920, 0.25
    %v927 = vsel %vm261, %v925, -inf
    %928 = vmax.xlane.f32.xlu0 %v927
    %v929 = vpop.xlane.xlu0 %928
    %v930 = vsel %vm261, %v926, -inf
    %931 = vmax.xlane.f32.xlu0 %v930
    %v932 = vpop.xlane.xlu0 %931
    %v933 = vsub.f32 %v925, %v929
    %v934 = vsub.f32 %v926, %v932
    %v935 = vmul.f32 %v933, 1.442695
    %v936 = vpow.pop %v935
    %v937 = vmul.f32 %v934, 1.442695
    %v938 = vpow.pop %v937
    %v939 = vsel %vm261, %v936, 0.0
    %940 = vadd.xlane.f32.xlu0 %v939
    %v941 = vpop.xlane.xlu0 %940
    %v942 = vsel %vm261, %v938, 0.0
    %943 = vadd.xlane.f32.xlu0 %v942
    %v944 = vpop.xlane.xlu0 %943
    %v945 = vrcp.pop %v941
    %v946 = vrcp.pop %v944
    %v947 = vmul.f32 %v936, %v945
    %v948 = vmul.f32 %v938, %v946
    %v949 = vpack.c.bf16 %v947, %v947
    %v950 = vpack.c.bf16 %v948, %v948
    %951 = vrot.lane.b32.xlu0 %v158, 80
    %v952 = vpop.permute.xlu0 %951
    %v954 = vsel %vm261, %v949, 0
    %v957 = vsel %vm289, %v952, 0
    %959 = vmatprep.subr.bf16.mxu0 0
    %960 = vmatpush1.bf16.msra.mxu0 %v957
    %961 = vmatprep.subr.bf16.mxu0 0
    %962 = vmatpush1.bf16.msra.mxu0 0
    %963 = vmatprep.subr.bf16.mxu0 0
    %964 = vmatpush1.bf16.msra.mxu0 0
    %965 = vmatprep.subr.bf16.mxu0 0
    %966 = vmatpush1.bf16.msra.mxu0 0
    %967 = vmatprep.subr.bf16.mxu0 0
    %968 = vmatpush1.bf16.msra.mxu0 0
    %969 = vmatprep.subr.bf16.mxu0 0
    %970 = vmatpush1.bf16.msra.mxu0 0
    %971 = vmatprep.subr.bf16.mxu0 0
    %972 = vmatpush1.bf16.msra.mxu0 0
    %973 = vmatprep.subr.bf16.mxu0 0
    %974 = vmatpush1.bf16.msra.mxu0 0
    %975 = vmatprep.subr.bf16.mxu0 0
    %976 = vmatpush1.bf16.msra.mxu0 0
    %977 = vmatprep.subr.bf16.mxu0 0
    %978 = vmatpush1.bf16.msra.mxu0 0
    %979 = vmatprep.subr.bf16.mxu0 0
    %980 = vmatpush1.bf16.msra.mxu0 0
    %981 = vmatprep.subr.bf16.mxu0 0
    %982 = vmatpush1.bf16.msra.mxu0 0
    %983 = vmatprep.subr.bf16.mxu0 0
    %984 = vmatpush1.bf16.msra.mxu0 0
    %985 = vmatprep.subr.bf16.mxu0 0
    %986 = vmatpush1.bf16.msra.mxu0 0
    %987 = vmatprep.subr.bf16.mxu0 0
    %988 = vmatpush1.bf16.msra.mxu0 0
    %989 = vmatprep.subr.bf16.mxu0 0
    %990 = vmatpush1.bf16.msra.mxu0 0
    %991 = vmatprep.mubr.bf16.mxu0 0
    %992 = vmatmul.mubr.bf16.gmra.mrb[0].mxu0 %v954
    %v993 = vpop.f32.mrb[0].mxu0
    %v994 = vadd.f32 0.0, %v993
    %v995 = vpop.f32.mrb[0].mxu0
    %v996 = vpop.f32.mrb[0].mxu0
    %v997 = vpop.f32.mrb[0].mxu0
    %998 = vdwg.mxu0
    %999 = vrot.lane.b32.xlu0 %v159, 80
    %v1000 = vpop.permute.xlu0 %999
    %v1002 = vsel %vm261, %v950, 0
    %v1005 = vsel %vm289, %v1000, 0
    %1007 = vmatprep.subr.bf16.mxu0 0
    %1008 = vmatpush1.bf16.msra.mxu0 %v1005
    %1009 = vmatprep.subr.bf16.mxu0 0
    %1010 = vmatpush1.bf16.msra.mxu0 0
    %1011 = vmatprep.subr.bf16.mxu0 0
    %1012 = vmatpush1.bf16.msra.mxu0 0
    %1013 = vmatprep.subr.bf16.mxu0 0
    %1014 = vmatpush1.bf16.msra.mxu0 0
    %1015 = vmatprep.subr.bf16.mxu0 0
    %1016 = vmatpush1.bf16.msra.mxu0 0
    %1017 = vmatprep.subr.bf16.mxu0 0
    %1018 = vmatpush1.bf16.msra.mxu0 0
    %1019 = vmatprep.subr.bf16.mxu0 0
    %1020 = vmatpush1.bf16.msra.mxu0 0
    %1021 = vmatprep.subr.bf16.mxu0 0
    %1022 = vmatpush1.bf16.msra.mxu0 0
    %1023 = vmatprep.subr.bf16.mxu0 0
    %1024 = vmatpush1.bf16.msra.mxu0 0
    %1025 = vmatprep.subr.bf16.mxu0 0
    %1026 = vmatpush1.bf16.msra.mxu0 0
    %1027 = vmatprep.subr.bf16.mxu0 0
    %1028 = vmatpush1.bf16.msra.mxu0 0
    %1029 = vmatprep.subr.bf16.mxu0 0
    %1030 = vmatpush1.bf16.msra.mxu0 0
    %1031 = vmatprep.subr.bf16.mxu0 0
    %1032 = vmatpush1.bf16.msra.mxu0 0
    %1033 = vmatprep.subr.bf16.mxu0 0
    %1034 = vmatpush1.bf16.msra.mxu0 0
    %1035 = vmatprep.subr.bf16.mxu0 0
    %1036 = vmatpush1.bf16.msra.mxu0 0
    %1037 = vmatprep.subr.bf16.mxu0 0
    %1038 = vmatpush1.bf16.msra.mxu0 0
    %1039 = vmatprep.mubr.bf16.mxu0 0
    %1040 = vmatmul.mubr.bf16.gmra.mrb[0].mxu0 %v1002
    %v1041 = vpop.f32.mrb[0].mxu0
    %v1042 = vadd.f32 0.0, %v1041
    %v1043 = vpop.f32.mrb[0].mxu0
    %v1044 = vpop.f32.mrb[0].mxu0
    %v1045 = vpop.f32.mrb[0].mxu0
    %1046 = vdwg.mxu0
    %1049 = vrot.lane.b32.xlu0 %v549, 16
    %v1050 = vpop.permute.xlu0 %1049
    %1051 = vrot.lane.b32.xlu0 %v598, 16
    %v1052 = vpop.permute.xlu0 %1051
    %1057 = vrot.lane.b32.xlu0 %v772, 32
    %v1058 = vpop.permute.xlu0 %1057
    %1059 = vrot.lane.b32.xlu0 %v820, 32
    %v1060 = vpop.permute.xlu0 %1059
    %1065 = vrot.lane.b32.xlu0 %v994, 48
    %v1066 = vpop.permute.xlu0 %1065
    %1067 = vrot.lane.b32.xlu0 %v1042, 48
    %v1068 = vpop.permute.xlu0 %1067
    %v1071 = vsel %vm163, %v328, %v1050
    %v1072 = vsel %vm163, %v374, %v1052
    %vm1073 = vcmask 261120
    %v1074 = vsel %vm1073, %v1071, %v1058
    %v1075 = vsel %vm1073, %v1072, %v1060
    %vm1076 = vcmask 392192
    %v1077 = vsel %vm1076, %v1074, %v1066
    %v1078 = vsel %vm1076, %v1075, %v1068
    %v1079 = vpack.c.bf16 %v1078, %v1077
    %v1080 = vld [vmem:[%s3] sm:$0xf]
    %v1081 = vld [vmem:[%s3 + $0x4] sm:$0xf]
    %v1082 = vld [vmem:[%s3 + $0x8] sm:$0xf]
    %v1083 = vld [vmem:[%s3 + $0xc] sm:$0xf]
    %v1084 = vld [vmem:[%s3 + $0x10] sm:$0xf]
    %v1085 = vld [vmem:[%s3 + $0x14] sm:$0xf]
    %v1086 = vld [vmem:[%s3 + $0x18] sm:$0xf]
    %v1087 = vld [vmem:[%s3 + $0x1c] sm:$0xf]
    %v1088 = vld [vmem:[%s4] sm:$0x1]
    %v1090 = vlaneseq
    %v1091 = vshrl.u32 %v1090, 7
    %v1092 = vsub.s32 0, %v1091
    %v1093 = vrot.slane %v1088, %v1092
    %v1103 = vunpack.c.l.b16 %v1080
    %v1104 = vunpack.c.l.b16 %v1081
    %v1105 = vunpack.c.l.b16 %v1082
    %v1106 = vunpack.c.l.b16 %v1083
    %v1107 = vunpack.c.l.b16 %v1084
    %v1108 = vunpack.c.l.b16 %v1085
    %v1109 = vunpack.c.l.b16 %v1086
    %v1110 = vunpack.c.l.b16 %v1087
    %v1111 = vpack.c.b16 %v1104, %v1103
    %v1112 = vpack.c.b16 %v1106, %v1105
    %v1113 = vpack.c.b16 %v1108, %v1107
    %v1114 = vpack.c.b16 %v1110, %v1109
    %v1120 = vsel %vm109, %v1079, 0
    %1122 = vmatprep.subr.bf16.mxu0 0
    %1123 = vmatpush1.bf16.msra.mxu0 %v1111
    %1124 = vmatprep.subr.bf16.mxu0 0
    %1125 = vmatpush1.bf16.msra.mxu0 %v1112
    %1126 = vmatprep.subr.bf16.mxu0 0
    %1127 = vmatpush1.bf16.msra.mxu0 %v1113
    %1128 = vmatprep.subr.bf16.mxu0 0
    %1129 = vmatpush1.bf16.msra.mxu0 %v1114
    %1130 = vmatprep.subr.bf16.mxu0 0
    %1131 = vmatpush1.bf16.msra.mxu0 0
    %1132 = vmatprep.subr.bf16.mxu0 0
    %1133 = vmatpush1.bf16.msra.mxu0 0
    %1134 = vmatprep.subr.bf16.mxu0 0
    %1135 = vmatpush1.bf16.msra.mxu0 0
    %1136 = vmatprep.subr.bf16.mxu0 0
    %1137 = vmatpush1.bf16.msra.mxu0 0
    %1138 = vmatprep.subr.bf16.mxu0 0
    %1139 = vmatpush1.bf16.msra.mxu0 0
    %1140 = vmatprep.subr.bf16.mxu0 0
    %1141 = vmatpush1.bf16.msra.mxu0 0
    %1142 = vmatprep.subr.bf16.mxu0 0
    %1143 = vmatpush1.bf16.msra.mxu0 0
    %1144 = vmatprep.subr.bf16.mxu0 0
    %1145 = vmatpush1.bf16.msra.mxu0 0
    %1146 = vmatprep.subr.bf16.mxu0 0
    %1147 = vmatpush1.bf16.msra.mxu0 0
    %1148 = vmatprep.subr.bf16.mxu0 0
    %1149 = vmatpush1.bf16.msra.mxu0 0
    %1150 = vmatprep.subr.bf16.mxu0 0
    %1151 = vmatpush1.bf16.msra.mxu0 0
    %1152 = vmatprep.subr.bf16.mxu0 0
    %1153 = vmatpush1.bf16.msra.mxu0 0
    %1154 = vmatprep.mubr.bf16.mxu0 0
    %1155 = vmatmul.mubr.bf16.gmra.mrb[0].mxu0 %v1120
    %v1156 = vpop.f32.mrb[0].mxu0
    %v1157 = vadd.f32 %v1093, %v1156
    %v1158 = vpop.f32.mrb[0].mxu0
    %v1159 = vpop.f32.mrb[0].mxu0
    %v1160 = vadd.f32 %v1093, %v1159
    %v1161 = vpop.f32.mrb[0].mxu0
    %1162 = vdwg.mxu0
    %v1163 = vadd.f32 %v46, %v1157
    %v1164 = vadd.f32 %v47, %v1160
    %v1165 = vld [vmem:[%s5] sm:$0x1]
    %v1166 = vld [vmem:[%s6] sm:$0x1]
    %v1167 = vsel %vm109, %v1163, 0.0
    %1168 = vadd.xlane.f32.xlu0 %v1167
    %v1169 = vpop.xlane.xlu0 %1168
    %v1170 = vsel %vm109, %v1164, 0.0
    %1171 = vadd.xlane.f32.xlu0 %v1170
    %v1172 = vpop.xlane.xlu0 %1171
    %v1173 = vrcp.pop 64.0
    %v1174 = vmul.f32 %v1169, %v1173
    %v1175 = vmul.f32 %v1172, %v1173
    %v1176 = vsub.f32 %v1163, %v1174
    %v1177 = vsub.f32 %v1164, %v1175
    %v1178 = vmul.f32 %v1176, %v1176
    %v1179 = vmul.f32 %v1177, %v1177
    %v1180 = vsel %vm109, %v1178, 0.0
    %1181 = vadd.xlane.f32.xlu0 %v1180
    %v1182 = vpop.xlane.xlu0 %1181
    %v1183 = vsel %vm109, %v1179, 0.0
    %1184 = vadd.xlane.f32.xlu0 %v1183
    %v1185 = vpop.xlane.xlu0 %1184
    %v1186 = vmul.f32 %v1182, %v1173
    %v1187 = vmul.f32 %v1185, %v1173
    %v1188 = vadd.f32 %v1186, 1e-05
    %v1189 = vadd.f32 %v1187, 1e-05
    %v1190 = vrsqrt.pop %v1188
    %v1191 = vrsqrt.pop %v1189
    %v1192 = vmul.f32 %v1176, %v1190
    %v1193 = vmul.f32 %v1177, %v1191
    %v1195 = vlaneseq
    %v1196 = vshrl.u32 %v1195, 7
    %v1197 = vsub.s32 0, %v1196
    %v1198 = vrot.slane %v1165, %v1197
    %v1200 = vmul.f32 %v1192, %v1198
    %v1201 = vmul.f32 %v1193, %v1198
    %v1203 = vlaneseq
    %v1204 = vshrl.u32 %v1203, 7
    %v1205 = vsub.s32 0, %v1204
    %v1206 = vrot.slane %v1166, %v1205
    %v1208 = vadd.f32 %v1200, %v1206
    %v1209 = vadd.f32 %v1201, %v1206
    %v1210 = vpack.c.bf16 %v1209, %v1208
    %v1211 = vld [vmem:[%s7] sm:$0xff]
    %v1212 = vld [vmem:[%s7 + $0x8] sm:$0xff]
    %v1213 = vld [vmem:[%s7 + $0x10] sm:$0xff]
    %v1214 = vld [vmem:[%s7 + $0x18] sm:$0xff]
    %v1215 = vld [vmem:[%s7 + $0x20] sm:$0xff]
    %v1216 = vld [vmem:[%s7 + $0x28] sm:$0xff]
    %v1217 = vld [vmem:[%s7 + $0x30] sm:$0xff]
    %v1218 = vld [vmem:[%s7 + $0x38] sm:$0xff]
    %v1219 = vld [vmem:[%s8] sm:$0x3]
    %v1221 = vlaneseq
    %v1222 = vshrl.u32 %v1221, 7
    %v1223 = vsub.s32 0, %v1222
    %v1224 = vrot.slane %v1219, %v1223
    %v1225 = vlaneseq
    %v1226 = vshrl.u32 %v1225, 7
    %v1227 = vsub.s32 1, %v1226
    %v1228 = vrot.slane %v1219, %v1227
    %v1239 = vunpack.c.l.b16 %v1211
    %v1240 = vunpack.c.h.b16 %v1211
    %v1241 = vunpack.c.l.b16 %v1212
    %v1242 = vunpack.c.h.b16 %v1212
    %v1243 = vunpack.c.l.b16 %v1213
    %v1244 = vunpack.c.h.b16 %v1213
    %v1245 = vunpack.c.l.b16 %v1214
    %v1246 = vunpack.c.h.b16 %v1214
    %v1247 = vunpack.c.l.b16 %v1215
    %v1248 = vunpack.c.h.b16 %v1215
    %v1249 = vunpack.c.l.b16 %v1216
    %v1250 = vunpack.c.h.b16 %v1216
    %v1251 = vunpack.c.l.b16 %v1217
    %v1252 = vunpack.c.h.b16 %v1217
    %v1253 = vunpack.c.l.b16 %v1218
    %v1254 = vunpack.c.h.b16 %v1218
    %v1255 = vpack.c.b16 %v1241, %v1239
    %v1256 = vpack.c.b16 %v1242, %v1240
    %v1257 = vpack.c.b16 %v1245, %v1243
    %v1258 = vpack.c.b16 %v1246, %v1244
    %v1259 = vpack.c.b16 %v1249, %v1247
    %v1260 = vpack.c.b16 %v1250, %v1248
    %v1261 = vpack.c.b16 %v1253, %v1251
    %v1262 = vpack.c.b16 %v1254, %v1252
    %v1272 = vsel %vm109, %v1210, 0
    %1274 = vmatprep.subr.bf16.mxu0 %v1256
    %1275 = vmatpush1.bf16.msra.mxu0 %v1255
    %1276 = vmatprep.subr.bf16.mxu0 %v1258
    %1277 = vmatpush1.bf16.msra.mxu0 %v1257
    %1278 = vmatprep.subr.bf16.mxu0 %v1260
    %1279 = vmatpush1.bf16.msra.mxu0 %v1259
    %1280 = vmatprep.subr.bf16.mxu0 %v1262
    %1281 = vmatpush1.bf16.msra.mxu0 %v1261
    %1282 = vmatprep.subr.bf16.mxu0 0
    %1283 = vmatpush1.bf16.msra.mxu0 0
    %1284 = vmatprep.subr.bf16.mxu0 0
    %1285 = vmatpush1.bf16.msra.mxu0 0
    %1286 = vmatprep.subr.bf16.mxu0 0
    %1287 = vmatpush1.bf16.msra.mxu0 0
    %1288 = vmatprep.subr.bf16.mxu0 0
    %1289 = vmatpush1.bf16.msra.mxu0 0
    %1290 = vmatprep.subr.bf16.mxu0 0
    %1291 = vmatpush1.bf16.msra.mxu0 0
    %1292 = vmatprep.subr.bf16.mxu0 0
    %1293 = vmatpush1.bf16.msra.mxu0 0
    %1294 = vmatprep.subr.bf16.mxu0 0
    %1295 = vmatpush1.bf16.msra.mxu0 0
    %1296 = vmatprep.subr.bf16.mxu0 0
    %1297 = vmatpush1.bf16.msra.mxu0 0
    %1298 = vmatprep.subr.bf16.mxu0 0
    %1299 = vmatpush1.bf16.msra.mxu0 0
    %1300 = vmatprep.subr.bf16.mxu0 0
    %1301 = vmatpush1.bf16.msra.mxu0 0
    %1302 = vmatprep.subr.bf16.mxu0 0
    %1303 = vmatpush1.bf16.msra.mxu0 0
    %1304 = vmatprep.subr.bf16.mxu0 0
    %1305 = vmatpush1.bf16.msra.mxu0 0
    %1306 = vmatprep.mubr.bf16.mxu0 0
    %1307 = vmatmul.mubr.bf16.gmra.mrb[0].mxu0 %v1272
    %v1308 = vpop.f32.mrb[0].mxu0
    %v1309 = vadd.f32 %v1224, %v1308
    %v1310 = vpop.f32.mrb[0].mxu0
    %v1311 = vadd.f32 %v1228, %v1310
    %v1312 = vpop.f32.mrb[0].mxu0
    %v1313 = vadd.f32 %v1224, %v1312
    %v1314 = vpop.f32.mrb[0].mxu0
    %v1315 = vadd.f32 %v1228, %v1314
    %1316 = vdwg.mxu0
    %v1317 = vmax.f32 %v1309, 0.0
    %v1318 = vmax.f32 %v1311, 0.0
    %v1319 = vmax.f32 %v1313, 0.0
    %v1320 = vmax.f32 %v1315, 0.0
    %v1321 = vpack.c.bf16 %v1319, %v1317
    %v1322 = vpack.c.bf16 %v1320, %v1318
    %v1323 = vld [vmem:[%s9] sm:$0xf]
    %v1324 = vld [vmem:[%s9 + $0x4] sm:$0xf]
    %v1325 = vld [vmem:[%s9 + $0x8] sm:$0xf]
    %v1326 = vld [vmem:[%s9 + $0xc] sm:$0xf]
    %v1327 = vld [vmem:[%s9 + $0x10] sm:$0xf]
    %v1328 = vld [vmem:[%s9 + $0x14] sm:$0xf]
    %v1329 = vld [vmem:[%s9 + $0x18] sm:$0xf]
    %v1330 = vld [vmem:[%s9 + $0x1c] sm:$0xf]
    %v1331 = vld [vmem:[%s9 + $0x20] sm:$0xf]
    %v1332 = vld [vmem:[%s9 + $0x24] sm:$0xf]
    %v1333 = vld [vmem:[%s9 + $0x28] sm:$0xf]
    %v1334 = vld [vmem:[%s9 + $0x2c] sm:$0xf]
    %v1335 = vld [vmem:[%s9 + $0x30] sm:$0xf]
    %v1336 = vld [vmem:[%s9 + $0x34] sm:$0xf]
    %v1337 = vld [vmem:[%s9 + $0x38] sm:$0xf]
    %v1338 = vld [vmem:[%s9 + $0x3c] sm:$0xf]
    %v1339 = vld [vmem:[%s9 + $0x40] sm:$0xf]
    %v1340 = vld [vmem:[%s9 + $0x44] sm:$0xf]
    %v1341 = vld [vmem:[%s9 + $0x48] sm:$0xf]
    %v1342 = vld [vmem:[%s9 + $0x4c] sm:$0xf]
    %v1343 = vld [vmem:[%s9 + $0x50] sm:$0xf]
    %v1344 = vld [vmem:[%s9 + $0x54] sm:$0xf]
    %v1345 = vld [vmem:[%s9 + $0x58] sm:$0xf]
    %v1346 = vld [vmem:[%s9 + $0x5c] sm:$0xf]
    %v1347 = vld [vmem:[%s9 + $0x60] sm:$0xf]
    %v1348 = vld [vmem:[%s9 + $0x64] sm:$0xf]
    %v1349 = vld [vmem:[%s9 + $0x68] sm:$0xf]
    %v1350 = vld [vmem:[%s9 + $0x6c] sm:$0xf]
    %v1351 = vld [vmem:[%s9 + $0x70] sm:$0xf]
    %v1352 = vld [vmem:[%s9 + $0x74] sm:$0xf]
    %v1353 = vld [vmem:[%s9 + $0x78] sm:$0xf]
    %v1354 = vld [vmem:[%s9 + $0x7c] sm:$0xf]
    %v1355 = vld [vmem:[%s10] sm:$0x1]
    %v1357 = vlaneseq
    %v1358 = vshrl.u32 %v1357, 7
    %v1359 = vsub.s32 0, %v1358
    %v1360 = vrot.slane %v1355, %v1359
    %v1394 = vunpack.c.l.b16 %v1323
    %v1395 = vunpack.c.l.b16 %v1324
    %v1396 = vunpack.c.l.b16 %v1325
    %v1397 = vunpack.c.l.b16 %v1326
    %v1398 = vunpack.c.l.b16 %v1327
    %v1399 = vunpack.c.l.b16 %v1328
    %v1400 = vunpack.c.l.b16 %v1329
    %v1401 = vunpack.c.l.b16 %v1330
    %v1402 = vunpack.c.l.b16 %v1331
    %v1403 = vunpack.c.l.b16 %v1332
    %v1404 = vunpack.c.l.b16 %v1333
    %v1405 = vunpack.c.l.b16 %v1334
    %v1406 = vunpack.c.l.b16 %v1335
    %v1407 = vunpack.c.l.b16 %v1336
    %v1408 = vunpack.c.l.b16 %v1337
    %v1409 = vunpack.c.l.b16 %v1338
    %v1410 = vunpack.c.l.b16 %v1339
    %v1411 = vunpack.c.l.b16 %v1340
    %v1412 = vunpack.c.l.b16 %v1341
    %v1413 = vunpack.c.l.b16 %v1342
    %v1414 = vunpack.c.l.b16 %v1343
    %v1415 = vunpack.c.l.b16 %v1344
    %v1416 = vunpack.c.l.b16 %v1345
    %v1417 = vunpack.c.l.b16 %v1346
    %v1418 = vunpack.c.l.b16 %v1347
    %v1419 = vunpack.c.l.b16 %v1348
    %v1420 = vunpack.c.l.b16 %v1349
    %v1421 = vunpack.c.l.b16 %v1350
    %v1422 = vunpack.c.l.b16 %v1351
    %v1423 = vunpack.c.l.b16 %v1352
    %v1424 = vunpack.c.l.b16 %v1353
    %v1425 = vunpack.c.l.b16 %v1354
    %v1426 = vpack.c.b16 %v1395, %v1394
    %v1427 = vpack.c.b16 %v1397, %v1396
    %v1428 = vpack.c.b16 %v1399, %v1398
    %v1429 = vpack.c.b16 %v1401, %v1400
    %v1430 = vpack.c.b16 %v1403, %v1402
    %v1431 = vpack.c.b16 %v1405, %v1404
    %v1432 = vpack.c.b16 %v1407, %v1406
    %v1433 = vpack.c.b16 %v1409, %v1408
    %v1434 = vpack.c.b16 %v1411, %v1410
    %v1435 = vpack.c.b16 %v1413, %v1412
    %v1436 = vpack.c.b16 %v1415, %v1414
    %v1437 = vpack.c.b16 %v1417, %v1416
    %v1438 = vpack.c.b16 %v1419, %v1418
    %v1439 = vpack.c.b16 %v1421, %v1420
    %v1440 = vpack.c.b16 %v1423, %v1422
    %v1441 = vpack.c.b16 %v1425, %v1424
    %1458 = vmatprep.subr.bf16.mxu0 0
    %1459 = vmatpush1.bf16.msra.mxu0 %v1426
    %1460 = vmatprep.subr.bf16.mxu0 0
    %1461 = vmatpush1.bf16.msra.mxu0 %v1427
    %1462 = vmatprep.subr.bf16.mxu0 0
    %1463 = vmatpush1.bf16.msra.mxu0 %v1428
    %1464 = vmatprep.subr.bf16.mxu0 0
    %1465 = vmatpush1.bf16.msra.mxu0 %v1429
    %1466 = vmatprep.subr.bf16.mxu0 0
    %1467 = vmatpush1.bf16.msra.mxu0 %v1430
    %1468 = vmatprep.subr.bf16.mxu0 0
    %1469 = vmatpush1.bf16.msra.mxu0 %v1431
    %1470 = vmatprep.subr.bf16.mxu0 0
    %1471 = vmatpush1.bf16.msra.mxu0 %v1432
    %1472 = vmatprep.subr.bf16.mxu0 0
    %1473 = vmatpush1.bf16.msra.mxu0 %v1433
    %1474 = vmatprep.subr.bf16.mxu0 0
    %1475 = vmatpush1.bf16.msra.mxu0 %v1434
    %1476 = vmatprep.subr.bf16.mxu0 0
    %1477 = vmatpush1.bf16.msra.mxu0 %v1435
    %1478 = vmatprep.subr.bf16.mxu0 0
    %1479 = vmatpush1.bf16.msra.mxu0 %v1436
    %1480 = vmatprep.subr.bf16.mxu0 0
    %1481 = vmatpush1.bf16.msra.mxu0 %v1437
    %1482 = vmatprep.subr.bf16.mxu0 0
    %1483 = vmatpush1.bf16.msra.mxu0 %v1438
    %1484 = vmatprep.subr.bf16.mxu0 0
    %1485 = vmatpush1.bf16.msra.mxu0 %v1439
    %1486 = vmatprep.subr.bf16.mxu0 0
    %1487 = vmatpush1.bf16.msra.mxu0 %v1440
    %1488 = vmatprep.subr.bf16.mxu0 0
    %1489 = vmatpush1.bf16.msra.mxu0 %v1441
    %1490 = vmatprep.mubr.bf16.mxu0 %v1322
    %1491 = vmatmul.mubr.bf16.gmra.mrb[0].mxu0 %v1321
    %v1492 = vpop.f32.mrb[0].mxu0
    %v1493 = vadd.f32 %v1360, %v1492
    %v1494 = vpop.f32.mrb[0].mxu0
    %v1495 = vpop.f32.mrb[0].mxu0
    %v1496 = vadd.f32 %v1360, %v1495
    %v1497 = vpop.f32.mrb[0].mxu0
    %1498 = vdwg.mxu0
    %v1499 = vadd.f32 %v1208, %v1493
    %v1500 = vadd.f32 %v1209, %v1496
    %v1501 = vld [vmem:[%s11] sm:$0x1]
    %v1502 = vld [vmem:[%s12] sm:$0x1]
    %v1503 = vsel %vm109, %v1499, 0.0
    %1504 = vadd.xlane.f32.xlu0 %v1503
    %v1505 = vpop.xlane.xlu0 %1504
    %v1506 = vsel %vm109, %v1500, 0.0
    %1507 = vadd.xlane.f32.xlu0 %v1506
    %v1508 = vpop.xlane.xlu0 %1507
    %v1509 = vmul.f32 %v1505, %v1173
    %v1510 = vmul.f32 %v1508, %v1173
    %v1511 = vsub.f32 %v1499, %v1509
    %v1512 = vsub.f32 %v1500, %v1510
    %v1513 = vmul.f32 %v1511, %v1511
    %v1514 = vmul.f32 %v1512, %v1512
    %v1515 = vsel %vm109, %v1513, 0.0
    %1516 = vadd.xlane.f32.xlu0 %v1515
    %v1517 = vpop.xlane.xlu0 %1516
    %v1518 = vsel %vm109, %v1514, 0.0
    %1519 = vadd.xlane.f32.xlu0 %v1518
    %v1520 = vpop.xlane.xlu0 %1519
    %v1521 = vmul.f32 %v1517, %v1173
    %v1522 = vmul.f32 %v1520, %v1173
    %v1523 = vadd.f32 %v1521, 1e-05
    %v1524 = vadd.f32 %v1522, 1e-05
    %v1525 = vrsqrt.pop %v1523
    %v1526 = vrsqrt.pop %v1524
    %v1527 = vmul.f32 %v1511, %v1525
    %v1528 = vmul.f32 %v1512, %v1526
    %v1530 = vlaneseq
    %v1531 = vshrl.u32 %v1530, 7
    %v1532 = vsub.s32 0, %v1531
    %v1533 = vrot.slane %v1501, %v1532
    %v1535 = vmul.f32 %v1527, %v1533
    %v1536 = vmul.f32 %v1528, %v1533
    %v1538 = vlaneseq
    %v1539 = vshrl.u32 %v1538, 7
    %v1540 = vsub.s32 0, %v1539
    %v1541 = vrot.slane %v1502, %v1540
    %v1543 = vadd.f32 %v1535, %v1541
    %v1544 = vadd.f32 %v1536, %v1541
    %1545 = vst.msk [vmem:[#allocation2] sm:$0xff] %vm109, %v1543
    %1546 = vst.msk [vmem:[#allocation2 + $0x8] sm:$0xff] %vm109, %v1544
    // Predicated region
    $region54: #{tpu_custom_call.1} parent=1 // pred_check
      _
    $region55: #{tpu_custom_call.1} parent=1 // pred_check_branch
      %1548 = sbr.rel (0) target = $region57
    $region56: #{tpu_custom_call.1} parent=1 // pred_region
      %s1550 = ssub.s32 256, 256
      %1551 = vsyncadd [#allocation3], %s1550
      %s1552 = sshll.u32 [#allocation2], 4
      %s1553 = int_to_ptr.vmem [resolvable:$true] %s1552
      %1558 = dma.vmem_to_hbm [thread:$0]  %s1553, 256, %s13, [#allocation3], 128, 128, 8
    $region57: #{tpu_custom_call.1} parent=1 // pred_fallthru
      _
    // Predicated region
    $region58: #{tpu_custom_call.1} parent=1 // pred_check
      _
    $region59: #{tpu_custom_call.1} parent=1 // pred_check_branch
      %1560 = sbr.rel (0) target = $region61
    $region60: #{tpu_custom_call.1} parent=1 // pred_region
      %1561 = dma.done [#allocation3], 256
    $region61: #{tpu_custom_call.1} parent=1 // pred_fallthru
      _
    %1562 = vsyncpa [#allocation3], 1

</llo_original>
